<compile_context>
chip_gen: v6e
topology: v6e:2x2x1
jax: 0.10.0
libtpu: 0.0.40
codegen_flags: <defaults>
</compile_context>

<pallas_src>
import functools
import math

import jax
import jax.numpy as jnp
from jax.experimental import pallas as pl
from jax.experimental.pallas import tpu as pltpu  # noqa: F401  (TPU backend module)

D_MODEL = 32
NHEAD = 4
DIM_FF = 64
LN_EPS = 1e-5


def _layernorm(x, gamma, beta, eps=LN_EPS):
    mean = jnp.mean(x, axis=-1, keepdims=True)
    var = jnp.mean((x - mean) ** 2, axis=-1, keepdims=True)
    return (x - mean) * jax.lax.rsqrt(var + eps) * gamma + beta


def encoder_layer_kernel(
    x_ref, pos_ref,           # (B*S, D) activations
    wqk_ref,                  # (D, 2D)  [W_q * 1/sqrt(dh) | W_k], pre-transposed, mm dtype
    wv_ref,                   # (D, D)
    wo_ref,                   # (D, D)   out-proj, pre-transposed (head h = rows h*dh:(h+1)*dh)
    w1_ref,                   # (D, FF)
    w2_ref,                   # (FF, D)
    bias_ref,                 # (9, max(2D, FF)) f32: packed biases / LN affine params
    out_ref,                  # (B*S, D)
    *, batch, nhead,
):
    BS, D = x_ref.shape
    S = BS // batch
    H = nhead
    dh = D // H
    FF = w1_ref.shape[1]
    mm = wqk_ref.dtype                                  # matmul operand dtype (pre-cast)

    x = x_ref[...].astype(jnp.float32)                  # (BS, D)
    qk_in = x + pos_ref[...].astype(jnp.float32)        # with_pos_embed(src, pos)

    bias = bias_ref[...]                                # (9, W) f32
    b_qk = bias[0:1, :2 * D]
    b_v = bias[1:2, :D]
    b_o = bias[2:3, :D]
    g1 = bias[3:4, :D]
    be1 = bias[4:5, :D]
    b_1 = bias[5:6, :FF]
    b_2 = bias[6:7, :D]
    g2 = bias[7:8, :D]
    be2 = bias[8:9, :D]

    # Lane-packed projections (softmax scale already folded into W_q / b_q).
    qk = jnp.dot(qk_in.astype(mm), wqk_ref[...],
                 preferred_element_type=jnp.float32) + b_qk       # (BS, 2D) f32
    v = jnp.dot(x.astype(mm), wv_ref[...],
                preferred_element_type=jnp.float32) + b_v         # (BS, D)  f32

    qk3 = qk.astype(mm).reshape(batch, S, 2 * D)                  # free leading split
    v3 = v.astype(mm).reshape(batch, S, D)

    wo = wo_ref[...]                                              # (D, D) mm dtype

    attn = jnp.zeros((BS, D), jnp.float32)
    for h in range(H):                                            # static unroll, H=4
        lo, hi = h * dh, (h + 1) * dh
        q_h = qk3[:, :, lo:hi]                                    # (B, S, dh)
        k_h = qk3[:, :, D + lo:D + hi]                            # (B, S, dh)
        v_h = v3[:, :, lo:hi]                                     # (B, S, dh)

        s = jnp.einsum("bqd,bkd->bqk", q_h, k_h,
                       preferred_element_type=jnp.float32)        # (B, S, S) f32
        s = s - jnp.max(s, axis=-1, keepdims=True)
        e = jnp.exp(s)
        p = e / jnp.sum(e, axis=-1, keepdims=True)                # exact softmax

        o = jnp.einsum("bqk,bkd->bqd", p.astype(mm), v_h,
                       preferred_element_type=jnp.float32)        # (B, S, dh) f32
        # Per-head output projection accumulated over heads
        # (== concat(heads) @ Wo.T without a lane-concat relayout).
        attn = attn + jnp.dot(o.reshape(BS, dh).astype(mm), wo[lo:hi, :],
                              preferred_element_type=jnp.float32)
    attn = attn + b_o

    # Residual + LayerNorm1.
    y = _layernorm(x + attn, g1, be1)

    # Feed-forward: Linear -> ReLU -> Linear (dropout = identity in eval mode).
    h1 = jnp.dot(y.astype(mm), w1_ref[...],
                 preferred_element_type=jnp.float32) + b_1
    h1 = jnp.maximum(h1, 0.0)
    ff = jnp.dot(h1.astype(mm), w2_ref[...],
                 preferred_element_type=jnp.float32) + b_2

    # Residual + LayerNorm2.
    out_ref[...] = _layernorm(y + ff, g2, be2).astype(out_ref.dtype)


def prepare_params(params, nhead, matmul_dtype=jnp.bfloat16):
    """Pre-transpose, pre-scale and pre-cast weights; pack small vectors into one array."""
    D = params["wq"].shape[0]
    FF = params["w1"].shape[0]
    dh = D // nhead
    scale = 1.0 / math.sqrt(dh)

    # torch Linear computes x @ W.T + b -> store W.T (in, out); fold 1/sqrt(dh) into Q.
    w_qk = jnp.concatenate([params["wq"].T * scale, params["wk"].T],
                           axis=1).astype(matmul_dtype)             # (D, 2D)
    w_v = params["wv"].T.astype(matmul_dtype)                        # (D, D)
    w_o = params["wo"].T.astype(matmul_dtype)                        # (D, D)
    w_1 = params["w1"].T.astype(matmul_dtype)                        # (D, FF)
    w_2 = params["w2"].T.astype(matmul_dtype)                        # (FF, D)

    width = max(2 * D, FF)

    def row(v):
        v = jnp.asarray(v, jnp.float32).reshape(1, -1)
        return jnp.pad(v, ((0, 0), (0, width - v.shape[1])))

    b_qk = jnp.concatenate([params["bq"].reshape(1, -1) * scale,
                            params["bk"].reshape(1, -1)], axis=1)
    bias = jnp.concatenate([
        row(b_qk), row(params["bv"]), row(params["bo"]),
        row(params["g1"]), row(params["be1"]),
        row(params["b1"]), row(params["b2"]),
        row(params["g2"]), row(params["be2"]),
    ], axis=0)                                                       # (9, width) f32

    return [w_qk, w_v, w_o, w_1, w_2, bias]


def transformer_encoder_layer(src, pos, params, *, nhead=NHEAD,
                              matmul_dtype=jnp.bfloat16):
    """forward_post (normalize_before=False), src_mask=None, key_padding_mask=None,
    eval mode (dropout = identity)."""
    B, S, D = src.shape
    weights = prepare_params(params, nhead, matmul_dtype)
    kernel = functools.partial(encoder_layer_kernel, batch=B, nhead=nhead)

    # Whole problem fits trivially in VMEM -> single invocation, no grid, one DMA per
    # operand; src/pos/out are presented as lane-dense-ish 2D (B*S, D) slabs.
    out2d = pl.pallas_call(
        kernel,
        out_shape=jax.ShapeDtypeStruct((B * S, D), src.dtype),
    )(src.reshape(B * S, D), pos.reshape(B * S, D), *weights)
    return out2d.reshape(B, S, D)


def _reference(src, pos, params, nhead=NHEAD):
    """Pure-JAX reference of forward_post (eval mode)."""
    x = src
    qk_in = x + pos
    q = qk_in @ params["wq"].T + params["bq"]
    k = qk_in @ params["wk"].T + params["bk"]
    v = x @ params["wv"].T + params["bv"]
    B, S, D = x.shape
    dh = D // nhead
    q = q.reshape(B, S, nhead, dh).transpose(0, 2, 1, 3) / math.sqrt(dh)
    k = k.reshape(B, S, nhead, dh).transpose(0, 2, 1, 3)
    v = v.reshape(B, S, nhead, dh).transpose(0, 2, 1, 3)
    s = jnp.einsum("bhqd,bhkd->bhqk", q, k)
    a = jax.nn.softmax(s, axis=-1)
    o = jnp.einsum("bhqk,bhkd->bhqd", a, v).transpose(0, 2, 1, 3).reshape(B, S, D)
    o = o @ params["wo"].T + params["bo"]

    def ln(t, g, b):
        m = jnp.mean(t, axis=-1, keepdims=True)
        var = jnp.mean((t - m) ** 2, axis=-1, keepdims=True)
        return (t - m) / jnp.sqrt(var + LN_EPS) * g + b

    y = ln(x + o, params["g1"], params["be1"])
    ff = jnp.maximum(y @ params["w1"].T + params["b1"], 0.0) @ params["w2"].T + params["b2"]
    return ln(y + ff, params["g2"], params["be2"])


def make_params(key, d_model=D_MODEL, dim_ff=DIM_FF):
    ks = jax.random.split(key, 12)
    u = lambda k, shape, s: (jax.random.uniform(k, shape, jnp.float32) - 0.5) * 2 * s
    params = {
        "wq": u(ks[0], (d_model, d_model), 0.2),
        "wk": u(ks[1], (d_model, d_model), 0.2),
        "wv": u(ks[2], (d_model, d_model), 0.2),
        "bq": u(ks[3], (1, d_model), 0.05),
        "bk": u(ks[4], (1, d_model), 0.05),
        "bv": u(ks[5], (1, d_model), 0.05),
        "wo": u(ks[6], (d_model, d_model), 0.2),
        "bo": u(ks[7], (1, d_model), 0.05),
        "g1": jnp.ones((1, d_model), jnp.float32),
        "be1": jnp.zeros((1, d_model), jnp.float32),
        "w1": u(ks[8], (dim_ff, d_model), 0.2),
        "b1": u(ks[9], (1, dim_ff), 0.05),
        "w2": u(ks[10], (d_model, dim_ff), 0.2),
        "b2": u(ks[11], (1, d_model), 0.05),
        "g2": jnp.ones((1, d_model), jnp.float32),
        "be2": jnp.zeros((1, d_model), jnp.float32),
    }
    return params
    # TODO(synk): dropout (p=0.1) is omitted — kernel implements eval-mode forward.


if __name__ == "__main__":
    key = jax.random.PRNGKey(0)
    k_src, k_pos, k_par = jax.random.split(key, 3)

    B, S, D = 2, 8, D_MODEL
    src = jax.random.normal(k_src, (B, S, D), jnp.float32)
    pos = jax.random.normal(k_pos, (B, S, D), jnp.float32) * 0.1
    params = make_params(k_par)
    ref = _reference(src, pos, params, nhead=NHEAD)

    # f32 MXU operands: logic check at tighter tolerance.
    out_f32 = jax.block_until_ready(
        transformer_encoder_layer(src, pos, params, matmul_dtype=jnp.float32))
    assert out_f32.shape == (B, S, D)
    assert jnp.allclose(out_f32, ref, rtol=1e-2, atol=1e-2), \
        float(jnp.max(jnp.abs(out_f32 - ref)))

    # Default path: bf16 MXU operands with f32 accumulation (all TPU generations).
    out_bf16 = jax.block_until_ready(transformer_encoder_layer(src, pos, params))
    assert jnp.allclose(out_bf16, ref, rtol=3e-2, atol=3e-2), \
        float(jnp.max(jnp.abs(out_bf16 - ref)))

    # Larger batch: still one grid-free kernel invocation.
    B2 = 4
    src4 = jax.random.normal(jax.random.PRNGKey(1), (B2, S, D), jnp.float32)
    pos4 = jax.random.normal(jax.random.PRNGKey(2), (B2, S, D), jnp.float32) * 0.1
    ref4 = _reference(src4, pos4, params, nhead=NHEAD)
    out4 = jax.block_until_ready(
        transformer_encoder_layer(src4, pos4, params, matmul_dtype=jnp.float32))
    assert jnp.allclose(out4, ref4, rtol=1e-2, atol=1e-2), \
        float(jnp.max(jnp.abs(out4 - ref4)))

    print("KERNEL_OK")
</pallas_src>

<mosaic_0001>
module attributes {stable_mosaic.version = 11 : i64} {
  func.func @encoder_layer_kernel(%arg0: memref<16x32xf32, #tpu.memory_space<vmem>>, %arg1: memref<16x32xf32, #tpu.memory_space<vmem>>, %arg2: memref<32x64xf32, #tpu.memory_space<vmem>>, %arg3: memref<32x32xf32, #tpu.memory_space<vmem>>, %arg4: memref<32x32xf32, #tpu.memory_space<vmem>>, %arg5: memref<32x64xf32, #tpu.memory_space<vmem>>, %arg6: memref<64x32xf32, #tpu.memory_space<vmem>>, %arg7: memref<9x64xf32, #tpu.memory_space<vmem>>, %arg8: memref<16x32xf32, #tpu.memory_space<vmem>>) attributes {dimension_semantics = [], scalar_prefetch = 0 : i64, scratch_operands = 0 : i64, tpu.core_type = #tpu.core_type<tc>} {
    %c0 = arith.constant 0 : index
    %c0_0 = arith.constant 0 : index
    %0 = vector.load %arg0[%c0, %c0_0] : memref<16x32xf32, #tpu.memory_space<vmem>>, vector<16x32xf32>
    %c0_1 = arith.constant 0 : index
    %c0_2 = arith.constant 0 : index
    %1 = vector.load %arg1[%c0_1, %c0_2] : memref<16x32xf32, #tpu.memory_space<vmem>>, vector<16x32xf32>
    %2 = arith.addf %0, %1 : vector<16x32xf32>
    %c0_3 = arith.constant 0 : index
    %c0_4 = arith.constant 0 : index
    %3 = vector.load %arg7[%c0_3, %c0_4] : memref<9x64xf32, #tpu.memory_space<vmem>>, vector<9x64xf32>
    %4 = vector.extract_strided_slice %3 {offsets = [0, 0], sizes = [1, 64], strides = [1, 1]} : vector<9x64xf32> to vector<1x64xf32>
    %5 = vector.extract_strided_slice %3 {offsets = [1, 0], sizes = [1, 32], strides = [1, 1]} : vector<9x64xf32> to vector<1x32xf32>
    %6 = vector.extract_strided_slice %3 {offsets = [2, 0], sizes = [1, 32], strides = [1, 1]} : vector<9x64xf32> to vector<1x32xf32>
    %7 = vector.extract_strided_slice %3 {offsets = [3, 0], sizes = [1, 32], strides = [1, 1]} : vector<9x64xf32> to vector<1x32xf32>
    %8 = vector.extract_strided_slice %3 {offsets = [4, 0], sizes = [1, 32], strides = [1, 1]} : vector<9x64xf32> to vector<1x32xf32>
    %9 = vector.extract_strided_slice %3 {offsets = [5, 0], sizes = [1, 64], strides = [1, 1]} : vector<9x64xf32> to vector<1x64xf32>
    %10 = vector.extract_strided_slice %3 {offsets = [6, 0], sizes = [1, 32], strides = [1, 1]} : vector<9x64xf32> to vector<1x32xf32>
    %11 = vector.extract_strided_slice %3 {offsets = [7, 0], sizes = [1, 32], strides = [1, 1]} : vector<9x64xf32> to vector<1x32xf32>
    %12 = vector.extract_strided_slice %3 {offsets = [8, 0], sizes = [1, 32], strides = [1, 1]} : vector<9x64xf32> to vector<1x32xf32>
    %c0_5 = arith.constant 0 : index
    %c0_6 = arith.constant 0 : index
    %13 = vector.load %arg2[%c0_5, %c0_6] : memref<32x64xf32, #tpu.memory_space<vmem>>, vector<32x64xf32>
    %cst = arith.constant dense<0.000000e+00> : vector<16x64xf32>
    %14 = tpu.matmul %2, %13, %cst {dimension_numbers = #tpu.dot_dimension_numbers<[1], [0], [0], [1], [0, 0, 1, 1], [], []>} : vector<16x32xf32>, vector<32x64xf32>, vector<16x64xf32> -> vector<16x64xf32>
    %15 = vector.broadcast %4 : vector<1x64xf32> to vector<16x64xf32>
    %16 = arith.addf %14, %15 : vector<16x64xf32>
    %c0_7 = arith.constant 0 : index
    %c0_8 = arith.constant 0 : index
    %17 = vector.load %arg3[%c0_7, %c0_8] : memref<32x32xf32, #tpu.memory_space<vmem>>, vector<32x32xf32>
    %cst_9 = arith.constant dense<0.000000e+00> : vector<16x32xf32>
    %18 = tpu.matmul %0, %17, %cst_9 {dimension_numbers = #tpu.dot_dimension_numbers<[1], [0], [0], [1], [0, 0, 1, 1], [], []>} : vector<16x32xf32>, vector<32x32xf32>, vector<16x32xf32> -> vector<16x32xf32>
    %19 = vector.broadcast %5 : vector<1x32xf32> to vector<16x32xf32>
    %20 = arith.addf %18, %19 : vector<16x32xf32>
    %21 = vector.shape_cast %16 : vector<16x64xf32> to vector<2x8x64xf32>
    %22 = vector.shape_cast %20 : vector<16x32xf32> to vector<2x8x32xf32>
    %c0_10 = arith.constant 0 : index
    %c0_11 = arith.constant 0 : index
    %23 = vector.load %arg4[%c0_10, %c0_11] : memref<32x32xf32, #tpu.memory_space<vmem>>, vector<32x32xf32>
    %cst_12 = arith.constant 0.000000e+00 : f32
    %24 = vector.broadcast %cst_12 : f32 to vector<16x32xf32>
    %25 = vector.extract_strided_slice %21 {offsets = [0, 0, 0], sizes = [2, 8, 8], strides = [1, 1, 1]} : vector<2x8x64xf32> to vector<2x8x8xf32>
    %26 = vector.extract_strided_slice %21 {offsets = [0, 0, 32], sizes = [2, 8, 8], strides = [1, 1, 1]} : vector<2x8x64xf32> to vector<2x8x8xf32>
    %27 = vector.extract_strided_slice %22 {offsets = [0, 0, 0], sizes = [2, 8, 8], strides = [1, 1, 1]} : vector<2x8x32xf32> to vector<2x8x8xf32>
    "tpu.trace_start"() <{level = 10 : i32, message = "bqd,bkd->bqk"}> : () -> ()
    %cst_13 = arith.constant dense<0.000000e+00> : vector<2x8x8xf32>
    %28 = tpu.matmul %25, %26, %cst_13 {dimension_numbers = #tpu.dot_dimension_numbers<[2], [2], [1], [1], [0, 0, 0, 1, 1, 1], [0], [0]>} : vector<2x8x8xf32>, vector<2x8x8xf32>, vector<2x8x8xf32> -> vector<2x8x8xf32>
    "tpu.trace_stop"() : () -> ()
    %cst_14 = arith.constant dense<0xFF800000> : vector<2x8xf32>
    %29 = vector.multi_reduction <maximumf>, %28, %cst_14 [2] : vector<2x8x8xf32> to vector<2x8xf32>
    %30 = vector.shape_cast %29 : vector<2x8xf32> to vector<2x8x1xf32>
    %31 = vector.broadcast %30 : vector<2x8x1xf32> to vector<2x8x8xf32>
    %32 = arith.subf %28, %31 : vector<2x8x8xf32>
    %33 = math.exp %32 : vector<2x8x8xf32>
    %cst_15 = arith.constant dense<0.000000e+00> : vector<2x8xf32>
    %34 = vector.multi_reduction <add>, %33, %cst_15 [2] : vector<2x8x8xf32> to vector<2x8xf32>
    %35 = vector.shape_cast %34 : vector<2x8xf32> to vector<2x8x1xf32>
    %36 = vector.broadcast %35 : vector<2x8x1xf32> to vector<2x8x8xf32>
    %37 = arith.divf %33, %36 : vector<2x8x8xf32>
    "tpu.trace_start"() <{level = 10 : i32, message = "bqk,bkd->bqd"}> : () -> ()
    %cst_16 = arith.constant dense<0.000000e+00> : vector<2x8x8xf32>
    %38 = tpu.matmul %37, %27, %cst_16 {dimension_numbers = #tpu.dot_dimension_numbers<[2], [1], [1], [2], [0, 0, 0, 1, 1, 2], [0], [0]>} : vector<2x8x8xf32>, vector<2x8x8xf32>, vector<2x8x8xf32> -> vector<2x8x8xf32>
    "tpu.trace_stop"() : () -> ()
    %39 = vector.shape_cast %38 : vector<2x8x8xf32> to vector<16x8xf32>
    %40 = vector.extract_strided_slice %23 {offsets = [0, 0], sizes = [8, 32], strides = [1, 1]} : vector<32x32xf32> to vector<8x32xf32>
    %cst_17 = arith.constant dense<0.000000e+00> : vector<16x32xf32>
    %41 = tpu.matmul %39, %40, %cst_17 {dimension_numbers = #tpu.dot_dimension_numbers<[1], [0], [0], [1], [0, 0, 1, 1], [], []>} : vector<16x8xf32>, vector<8x32xf32>, vector<16x32xf32> -> vector<16x32xf32>
    %42 = arith.addf %24, %41 : vector<16x32xf32>
    %43 = vector.extract_strided_slice %21 {offsets = [0, 0, 8], sizes = [2, 8, 8], strides = [1, 1, 1]} : vector<2x8x64xf32> to vector<2x8x8xf32>
    %44 = vector.extract_strided_slice %21 {offsets = [0, 0, 40], sizes = [2, 8, 8], strides = [1, 1, 1]} : vector<2x8x64xf32> to vector<2x8x8xf32>
    %45 = vector.extract_strided_slice %22 {offsets = [0, 0, 8], sizes = [2, 8, 8], strides = [1, 1, 1]} : vector<2x8x32xf32> to vector<2x8x8xf32>
    "tpu.trace_start"() <{level = 10 : i32, message = "bqd,bkd->bqk"}> : () -> ()
    %cst_18 = arith.constant dense<0.000000e+00> : vector<2x8x8xf32>
    %46 = tpu.matmul %43, %44, %cst_18 {dimension_numbers = #tpu.dot_dimension_numbers<[2], [2], [1], [1], [0, 0, 0, 1, 1, 1], [0], [0]>} : vector<2x8x8xf32>, vector<2x8x8xf32>, vector<2x8x8xf32> -> vector<2x8x8xf32>
    "tpu.trace_stop"() : () -> ()
    %cst_19 = arith.constant dense<0xFF800000> : vector<2x8xf32>
    %47 = vector.multi_reduction <maximumf>, %46, %cst_19 [2] : vector<2x8x8xf32> to vector<2x8xf32>
    %48 = vector.shape_cast %47 : vector<2x8xf32> to vector<2x8x1xf32>
    %49 = vector.broadcast %48 : vector<2x8x1xf32> to vector<2x8x8xf32>
    %50 = arith.subf %46, %49 : vector<2x8x8xf32>
    %51 = math.exp %50 : vector<2x8x8xf32>
    %cst_20 = arith.constant dense<0.000000e+00> : vector<2x8xf32>
    %52 = vector.multi_reduction <add>, %51, %cst_20 [2] : vector<2x8x8xf32> to vector<2x8xf32>
    %53 = vector.shape_cast %52 : vector<2x8xf32> to vector<2x8x1xf32>
    %54 = vector.broadcast %53 : vector<2x8x1xf32> to vector<2x8x8xf32>
    %55 = arith.divf %51, %54 : vector<2x8x8xf32>
    "tpu.trace_start"() <{level = 10 : i32, message = "bqk,bkd->bqd"}> : () -> ()
    %cst_21 = arith.constant dense<0.000000e+00> : vector<2x8x8xf32>
    %56 = tpu.matmul %55, %45, %cst_21 {dimension_numbers = #tpu.dot_dimension_numbers<[2], [1], [1], [2], [0, 0, 0, 1, 1, 2], [0], [0]>} : vector<2x8x8xf32>, vector<2x8x8xf32>, vector<2x8x8xf32> -> vector<2x8x8xf32>
    "tpu.trace_stop"() : () -> ()
    %57 = vector.shape_cast %56 : vector<2x8x8xf32> to vector<16x8xf32>
    %58 = vector.extract_strided_slice %23 {offsets = [8, 0], sizes = [8, 32], strides = [1, 1]} : vector<32x32xf32> to vector<8x32xf32>
    %cst_22 = arith.constant dense<0.000000e+00> : vector<16x32xf32>
    %59 = tpu.matmul %57, %58, %cst_22 {dimension_numbers = #tpu.dot_dimension_numbers<[1], [0], [0], [1], [0, 0, 1, 1], [], []>} : vector<16x8xf32>, vector<8x32xf32>, vector<16x32xf32> -> vector<16x32xf32>
    %60 = arith.addf %42, %59 : vector<16x32xf32>
    %61 = vector.extract_strided_slice %21 {offsets = [0, 0, 16], sizes = [2, 8, 8], strides = [1, 1, 1]} : vector<2x8x64xf32> to vector<2x8x8xf32>
    %62 = vector.extract_strided_slice %21 {offsets = [0, 0, 48], sizes = [2, 8, 8], strides = [1, 1, 1]} : vector<2x8x64xf32> to vector<2x8x8xf32>
    %63 = vector.extract_strided_slice %22 {offsets = [0, 0, 16], sizes = [2, 8, 8], strides = [1, 1, 1]} : vector<2x8x32xf32> to vector<2x8x8xf32>
    "tpu.trace_start"() <{level = 10 : i32, message = "bqd,bkd->bqk"}> : () -> ()
    %cst_23 = arith.constant dense<0.000000e+00> : vector<2x8x8xf32>
    %64 = tpu.matmul %61, %62, %cst_23 {dimension_numbers = #tpu.dot_dimension_numbers<[2], [2], [1], [1], [0, 0, 0, 1, 1, 1], [0], [0]>} : vector<2x8x8xf32>, vector<2x8x8xf32>, vector<2x8x8xf32> -> vector<2x8x8xf32>
    "tpu.trace_stop"() : () -> ()
    %cst_24 = arith.constant dense<0xFF800000> : vector<2x8xf32>
    %65 = vector.multi_reduction <maximumf>, %64, %cst_24 [2] : vector<2x8x8xf32> to vector<2x8xf32>
    %66 = vector.shape_cast %65 : vector<2x8xf32> to vector<2x8x1xf32>
    %67 = vector.broadcast %66 : vector<2x8x1xf32> to vector<2x8x8xf32>
    %68 = arith.subf %64, %67 : vector<2x8x8xf32>
    %69 = math.exp %68 : vector<2x8x8xf32>
    %cst_25 = arith.constant dense<0.000000e+00> : vector<2x8xf32>
    %70 = vector.multi_reduction <add>, %69, %cst_25 [2] : vector<2x8x8xf32> to vector<2x8xf32>
    %71 = vector.shape_cast %70 : vector<2x8xf32> to vector<2x8x1xf32>
    %72 = vector.broadcast %71 : vector<2x8x1xf32> to vector<2x8x8xf32>
    %73 = arith.divf %69, %72 : vector<2x8x8xf32>
    "tpu.trace_start"() <{level = 10 : i32, message = "bqk,bkd->bqd"}> : () -> ()
    %cst_26 = arith.constant dense<0.000000e+00> : vector<2x8x8xf32>
    %74 = tpu.matmul %73, %63, %cst_26 {dimension_numbers = #tpu.dot_dimension_numbers<[2], [1], [1], [2], [0, 0, 0, 1, 1, 2], [0], [0]>} : vector<2x8x8xf32>, vector<2x8x8xf32>, vector<2x8x8xf32> -> vector<2x8x8xf32>
    "tpu.trace_stop"() : () -> ()
    %75 = vector.shape_cast %74 : vector<2x8x8xf32> to vector<16x8xf32>
    %76 = vector.extract_strided_slice %23 {offsets = [16, 0], sizes = [8, 32], strides = [1, 1]} : vector<32x32xf32> to vector<8x32xf32>
    %cst_27 = arith.constant dense<0.000000e+00> : vector<16x32xf32>
    %77 = tpu.matmul %75, %76, %cst_27 {dimension_numbers = #tpu.dot_dimension_numbers<[1], [0], [0], [1], [0, 0, 1, 1], [], []>} : vector<16x8xf32>, vector<8x32xf32>, vector<16x32xf32> -> vector<16x32xf32>
    %78 = arith.addf %60, %77 : vector<16x32xf32>
    %79 = vector.extract_strided_slice %21 {offsets = [0, 0, 24], sizes = [2, 8, 8], strides = [1, 1, 1]} : vector<2x8x64xf32> to vector<2x8x8xf32>
    %80 = vector.extract_strided_slice %21 {offsets = [0, 0, 56], sizes = [2, 8, 8], strides = [1, 1, 1]} : vector<2x8x64xf32> to vector<2x8x8xf32>
    %81 = vector.extract_strided_slice %22 {offsets = [0, 0, 24], sizes = [2, 8, 8], strides = [1, 1, 1]} : vector<2x8x32xf32> to vector<2x8x8xf32>
    "tpu.trace_start"() <{level = 10 : i32, message = "bqd,bkd->bqk"}> : () -> ()
    %cst_28 = arith.constant dense<0.000000e+00> : vector<2x8x8xf32>
    %82 = tpu.matmul %79, %80, %cst_28 {dimension_numbers = #tpu.dot_dimension_numbers<[2], [2], [1], [1], [0, 0, 0, 1, 1, 1], [0], [0]>} : vector<2x8x8xf32>, vector<2x8x8xf32>, vector<2x8x8xf32> -> vector<2x8x8xf32>
    "tpu.trace_stop"() : () -> ()
    %cst_29 = arith.constant dense<0xFF800000> : vector<2x8xf32>
    %83 = vector.multi_reduction <maximumf>, %82, %cst_29 [2] : vector<2x8x8xf32> to vector<2x8xf32>
    %84 = vector.shape_cast %83 : vector<2x8xf32> to vector<2x8x1xf32>
    %85 = vector.broadcast %84 : vector<2x8x1xf32> to vector<2x8x8xf32>
    %86 = arith.subf %82, %85 : vector<2x8x8xf32>
    %87 = math.exp %86 : vector<2x8x8xf32>
    %cst_30 = arith.constant dense<0.000000e+00> : vector<2x8xf32>
    %88 = vector.multi_reduction <add>, %87, %cst_30 [2] : vector<2x8x8xf32> to vector<2x8xf32>
    %89 = vector.shape_cast %88 : vector<2x8xf32> to vector<2x8x1xf32>
    %90 = vector.broadcast %89 : vector<2x8x1xf32> to vector<2x8x8xf32>
    %91 = arith.divf %87, %90 : vector<2x8x8xf32>
    "tpu.trace_start"() <{level = 10 : i32, message = "bqk,bkd->bqd"}> : () -> ()
    %cst_31 = arith.constant dense<0.000000e+00> : vector<2x8x8xf32>
    %92 = tpu.matmul %91, %81, %cst_31 {dimension_numbers = #tpu.dot_dimension_numbers<[2], [1], [1], [2], [0, 0, 0, 1, 1, 2], [0], [0]>} : vector<2x8x8xf32>, vector<2x8x8xf32>, vector<2x8x8xf32> -> vector<2x8x8xf32>
    "tpu.trace_stop"() : () -> ()
    %93 = vector.shape_cast %92 : vector<2x8x8xf32> to vector<16x8xf32>
    %94 = vector.extract_strided_slice %23 {offsets = [24, 0], sizes = [8, 32], strides = [1, 1]} : vector<32x32xf32> to vector<8x32xf32>
    %cst_32 = arith.constant dense<0.000000e+00> : vector<16x32xf32>
    %95 = tpu.matmul %93, %94, %cst_32 {dimension_numbers = #tpu.dot_dimension_numbers<[1], [0], [0], [1], [0, 0, 1, 1], [], []>} : vector<16x8xf32>, vector<8x32xf32>, vector<16x32xf32> -> vector<16x32xf32>
    %96 = arith.addf %78, %95 : vector<16x32xf32>
    %97 = vector.broadcast %6 : vector<1x32xf32> to vector<16x32xf32>
    %98 = arith.addf %96, %97 : vector<16x32xf32>
    %99 = arith.addf %0, %98 : vector<16x32xf32>
    %cst_33 = arith.constant dense<0.000000e+00> : vector<16xf32>
    %100 = vector.multi_reduction <add>, %99, %cst_33 [1] : vector<16x32xf32> to vector<16xf32>
    %101 = vector.shape_cast %100 : vector<16xf32> to vector<16x1xf32>
    %cst_34 = arith.constant 3.200000e+01 : f32
    %102 = vector.broadcast %cst_34 : f32 to vector<16x1xf32>
    %103 = arith.divf %101, %102 : vector<16x1xf32>
    %104 = vector.broadcast %103 : vector<16x1xf32> to vector<16x32xf32>
    %105 = arith.subf %99, %104 : vector<16x32xf32>
    %106 = arith.mulf %105, %105 : vector<16x32xf32>
    %cst_35 = arith.constant dense<0.000000e+00> : vector<16xf32>
    %107 = vector.multi_reduction <add>, %106, %cst_35 [1] : vector<16x32xf32> to vector<16xf32>
    %108 = vector.shape_cast %107 : vector<16xf32> to vector<16x1xf32>
    %cst_36 = arith.constant 3.200000e+01 : f32
    %109 = vector.broadcast %cst_36 : f32 to vector<16x1xf32>
    %110 = arith.divf %108, %109 : vector<16x1xf32>
    %111 = vector.broadcast %103 : vector<16x1xf32> to vector<16x32xf32>
    %112 = arith.subf %99, %111 : vector<16x32xf32>
    %cst_37 = arith.constant 9.99999974E-6 : f32
    %113 = vector.broadcast %cst_37 : f32 to vector<16x1xf32>
    %114 = arith.addf %110, %113 : vector<16x1xf32>
    %115 = math.rsqrt %114 : vector<16x1xf32>
    %116 = vector.broadcast %115 : vector<16x1xf32> to vector<16x32xf32>
    %117 = arith.mulf %112, %116 : vector<16x32xf32>
    %118 = vector.broadcast %7 : vector<1x32xf32> to vector<16x32xf32>
    %119 = arith.mulf %117, %118 : vector<16x32xf32>
    %120 = vector.broadcast %8 : vector<1x32xf32> to vector<16x32xf32>
    %121 = arith.addf %119, %120 : vector<16x32xf32>
    %c0_38 = arith.constant 0 : index
    %c0_39 = arith.constant 0 : index
    %122 = vector.load %arg5[%c0_38, %c0_39] : memref<32x64xf32, #tpu.memory_space<vmem>>, vector<32x64xf32>
    %cst_40 = arith.constant dense<0.000000e+00> : vector<16x64xf32>
    %123 = tpu.matmul %121, %122, %cst_40 {dimension_numbers = #tpu.dot_dimension_numbers<[1], [0], [0], [1], [0, 0, 1, 1], [], []>} : vector<16x32xf32>, vector<32x64xf32>, vector<16x64xf32> -> vector<16x64xf32>
    %124 = vector.broadcast %9 : vector<1x64xf32> to vector<16x64xf32>
    %125 = arith.addf %123, %124 : vector<16x64xf32>
    %cst_41 = arith.constant 0.000000e+00 : f32
    %126 = vector.broadcast %cst_41 : f32 to vector<16x64xf32>
    %127 = arith.maximumf %125, %126 : vector<16x64xf32>
    %c0_42 = arith.constant 0 : index
    %c0_43 = arith.constant 0 : index
    %128 = vector.load %arg6[%c0_42, %c0_43] : memref<64x32xf32, #tpu.memory_space<vmem>>, vector<64x32xf32>
    %cst_44 = arith.constant dense<0.000000e+00> : vector<16x32xf32>
    %129 = tpu.matmul %127, %128, %cst_44 {dimension_numbers = #tpu.dot_dimension_numbers<[1], [0], [0], [1], [0, 0, 1, 1], [], []>} : vector<16x64xf32>, vector<64x32xf32>, vector<16x32xf32> -> vector<16x32xf32>
    %130 = vector.broadcast %10 : vector<1x32xf32> to vector<16x32xf32>
    %131 = arith.addf %129, %130 : vector<16x32xf32>
    %132 = arith.addf %121, %131 : vector<16x32xf32>
    %cst_45 = arith.constant dense<0.000000e+00> : vector<16xf32>
    %133 = vector.multi_reduction <add>, %132, %cst_45 [1] : vector<16x32xf32> to vector<16xf32>
    %134 = vector.shape_cast %133 : vector<16xf32> to vector<16x1xf32>
    %cst_46 = arith.constant 3.200000e+01 : f32
    %135 = vector.broadcast %cst_46 : f32 to vector<16x1xf32>
    %136 = arith.divf %134, %135 : vector<16x1xf32>
    %137 = vector.broadcast %136 : vector<16x1xf32> to vector<16x32xf32>
    %138 = arith.subf %132, %137 : vector<16x32xf32>
    %139 = arith.mulf %138, %138 : vector<16x32xf32>
    %cst_47 = arith.constant dense<0.000000e+00> : vector<16xf32>
    %140 = vector.multi_reduction <add>, %139, %cst_47 [1] : vector<16x32xf32> to vector<16xf32>
    %141 = vector.shape_cast %140 : vector<16xf32> to vector<16x1xf32>
    %cst_48 = arith.constant 3.200000e+01 : f32
    %142 = vector.broadcast %cst_48 : f32 to vector<16x1xf32>
    %143 = arith.divf %141, %142 : vector<16x1xf32>
    %144 = vector.broadcast %136 : vector<16x1xf32> to vector<16x32xf32>
    %145 = arith.subf %132, %144 : vector<16x32xf32>
    %cst_49 = arith.constant 9.99999974E-6 : f32
    %146 = vector.broadcast %cst_49 : f32 to vector<16x1xf32>
    %147 = arith.addf %143, %146 : vector<16x1xf32>
    %148 = math.rsqrt %147 : vector<16x1xf32>
    %149 = vector.broadcast %148 : vector<16x1xf32> to vector<16x32xf32>
    %150 = arith.mulf %145, %149 : vector<16x32xf32>
    %151 = vector.broadcast %11 : vector<1x32xf32> to vector<16x32xf32>
    %152 = arith.mulf %150, %151 : vector<16x32xf32>
    %153 = vector.broadcast %12 : vector<1x32xf32> to vector<16x32xf32>
    %154 = arith.addf %152, %153 : vector<16x32xf32>
    %c0_50 = arith.constant 0 : index
    %c0_51 = arith.constant 0 : index
    %155 = vector.load %arg8[%c0_50, %c0_51] : memref<16x32xf32, #tpu.memory_space<vmem>>, vector<16x32xf32>
    tpu.vector_store %arg8[%c0_50, %c0_51], %154 {strides = array<i32>} : memref<16x32xf32, #tpu.memory_space<vmem>>, vector<16x32xf32>,
    return
  }
}

</mosaic_0001>

<llo_original>
// kernel: tpu_custom_call.1
$region0: #{tpu_custom_call.1}
  #allocation0 [shape = 'u32[]', space=smem, size = 0x4, offset = 0x4, fixed_abs, tag = 'smem constant byte address 0x4 - core index']
  #allocation1 [shape = 'u32[144,128]{1,0:T(1,128)}', space=vmem, size = 0x12000, scoped, tag = 'internal scratch']
  %s0 = inlined_call_operand.hbm [shape: f32[16,32], index: 0, kind: input, shape index: {}]
  %s1 = inlined_call_operand.hbm [shape: f32[16,32], index: 1, kind: input, shape index: {}]
  %s2 = inlined_call_operand.vmem [shape: f32[32,64], index: 2, kind: input, shape index: {}]
  %s3 = inlined_call_operand.vmem [shape: f32[32,32], index: 3, kind: input, shape index: {}]
  %s4 = inlined_call_operand.vmem [shape: f32[32,32], index: 4, kind: input, shape index: {}]
  %s5 = inlined_call_operand.hbm [shape: f32[32,64], index: 5, kind: input, shape index: {}]
  %s6 = inlined_call_operand.vmem [shape: f32[64,32], index: 6, kind: input, shape index: {}]
  %s7 = inlined_call_operand.hbm [shape: f32[9,64], index: 7, kind: input, shape index: {}]
  %s8 = inlined_call_operand.hbm [shape: f32[16,32], index: 8, kind: output, shape index: {}]
  %s9 = sld [smem:[#allocation0]]
  $region58: #{tpu_custom_call.1} parent=0
    _
  %s11 = ssub.s32 1, %s9
  %s12 = scalar_select 0, %s11, %s9
  $region1: #{tpu_custom_call.1} parent=0
    #allocation2 [shape = 'u8[8192]{0}', space=vmem, size = 0x2000, scoped, tag = 'input window, operand 0, single buffered']
    #allocation3 [shape = 's32[1]{0}', space=sflag, size = 0x4, scoped, tag = 'scoped memory for tpu_custom_call.1']
    #allocation4 [shape = 's32[1]{0}', space=sflag, size = 0x4, scoped, tag = 'scoped memory for tpu_custom_call.1']
    #allocation5 [shape = 'u8[8192]{0}', space=vmem, size = 0x2000, scoped, tag = 'input window, operand 1, single buffered']
    #allocation6 [shape = 's32[1]{0}', space=sflag, size = 0x4, scoped, tag = 'scoped memory for tpu_custom_call.1']
    #allocation7 [shape = 'u8[16384]{0}', space=vmem, size = 0x4000, scoped, tag = 'input window, operand 5, single buffered']
    #allocation8 [shape = 'u8[8192]{0}', space=vmem, size = 0x2000, scoped, tag = 'input window, operand 7, single buffered']
    #allocation9 [shape = 's32[1]{0}', space=sflag, size = 0x4, scoped, tag = 'scoped memory for tpu_custom_call.1']
    #allocation10 [shape = 'u8[8192]{0}', space=vmem, size = 0x2000, scoped, tag = 'output window, operand 0, single buffered']
    %13 = vsyncpa [#allocation3], 0
    %14 = vsyncpa [#allocation6], 0
    %15 = vsyncpa [#allocation9], 0
    %16 = vsyncpa [#allocation4], 0
    // Predicated region
    $region2: #{tpu_custom_call.1} parent=1 // pred_check
      _
    $region3: #{tpu_custom_call.1} parent=1 // pred_check_branch
      %18 = sbr.rel (0) target = $region5
    $region4: #{tpu_custom_call.1} parent=1 // pred_region
      %s20 = ssub.s32 256, 256
      %21 = vsyncadd [#allocation3], %s20
      %s22 = sshll.u32 [#allocation2], 4
      %s23 = int_to_ptr.vmem [resolvable:$true] %s22
      %28 = dma.hbm_to_vmem [thread:$0]  %s0, 256, %s23, [#allocation3], 128, 128, 8
    $region5: #{tpu_custom_call.1} parent=1 // pred_fallthru
      _
    // Predicated region
    $region6: #{tpu_custom_call.1} parent=1 // pred_check
      _
    $region7: #{tpu_custom_call.1} parent=1 // pred_check_branch
      %30 = sbr.rel (0) target = $region9
    $region8: #{tpu_custom_call.1} parent=1 // pred_region
      %s32 = ssub.s32 256, 256
      %33 = vsyncadd [#allocation6], %s32
      %s34 = sshll.u32 [#allocation5], 4
      %s35 = int_to_ptr.vmem [resolvable:$true] %s34
      %40 = dma.hbm_to_vmem [thread:$0]  %s1, 256, %s35, [#allocation6], 128, 128, 8
    $region9: #{tpu_custom_call.1} parent=1 // pred_fallthru
      _
    // Predicated region
    $region10: #{tpu_custom_call.1} parent=1 // pred_check
      _
    $region11: #{tpu_custom_call.1} parent=1 // pred_check_branch
      %42 = sbr.rel (0) target = $region13
    $region12: #{tpu_custom_call.1} parent=1 // pred_region
      _
    $region13: #{tpu_custom_call.1} parent=1 // pred_fallthru
      _
    // Predicated region
    $region14: #{tpu_custom_call.1} parent=1 // pred_check
      _
    $region15: #{tpu_custom_call.1} parent=1 // pred_check_branch
      %44 = sbr.rel (0) target = $region17
    $region16: #{tpu_custom_call.1} parent=1 // pred_region
      _
    $region17: #{tpu_custom_call.1} parent=1 // pred_fallthru
      _
    // Predicated region
    $region18: #{tpu_custom_call.1} parent=1 // pred_check
      _
    $region19: #{tpu_custom_call.1} parent=1 // pred_check_branch
      %46 = sbr.rel (0) target = $region21
    $region20: #{tpu_custom_call.1} parent=1 // pred_region
      _
    $region21: #{tpu_custom_call.1} parent=1 // pred_fallthru
      _
    // Predicated region
    $region22: #{tpu_custom_call.1} parent=1 // pred_check
      _
    $region23: #{tpu_custom_call.1} parent=1 // pred_check_branch
      %48 = sbr.rel (0) target = $region25
    $region24: #{tpu_custom_call.1} parent=1 // pred_region
      %s50 = ssub.s32 512, 512
      %51 = vsyncadd [#allocation6], %s50
      %s52 = sshll.u32 [#allocation7], 4
      %s53 = int_to_ptr.vmem [resolvable:$true] %s52
      %58 = dma.hbm_to_vmem [thread:$0]  %s5, 512, %s53, [#allocation6], 128, 128, 8
    $region25: #{tpu_custom_call.1} parent=1 // pred_fallthru
      _
    // Predicated region
    $region26: #{tpu_custom_call.1} parent=1 // pred_check
      _
    $region27: #{tpu_custom_call.1} parent=1 // pred_check_branch
      %60 = sbr.rel (0) target = $region29
    $region28: #{tpu_custom_call.1} parent=1 // pred_region
      _
    $region29: #{tpu_custom_call.1} parent=1 // pred_fallthru
      _
    // Predicated region
    $region30: #{tpu_custom_call.1} parent=1 // pred_check
      _
    $region31: #{tpu_custom_call.1} parent=1 // pred_check_branch
      %62 = sbr.rel (0) target = $region33
    $region32: #{tpu_custom_call.1} parent=1 // pred_region
      %s64 = ssub.s32 256, 256
      %65 = vsyncadd [#allocation9], %s64
      %s66 = sshll.u32 [#allocation8], 4
      %s67 = int_to_ptr.vmem [resolvable:$true] %s66
      %72 = dma.hbm_to_vmem [thread:$0]  %s7, 256, %s67, [#allocation9], 128, 128, 8
    $region33: #{tpu_custom_call.1} parent=1 // pred_fallthru
      _
    // Predicated region
    $region34: #{tpu_custom_call.1} parent=1 // pred_check
      _
    $region35: #{tpu_custom_call.1} parent=1 // pred_check_branch
      %74 = sbr.rel (0) target = $region37
    $region36: #{tpu_custom_call.1} parent=1 // pred_region
      %75 = dma.done [#allocation3], 256
    $region37: #{tpu_custom_call.1} parent=1 // pred_fallthru
      _
    // Predicated region
    $region38: #{tpu_custom_call.1} parent=1 // pred_check
      _
    $region39: #{tpu_custom_call.1} parent=1 // pred_check_branch
      %77 = sbr.rel (0) target = $region41
    $region40: #{tpu_custom_call.1} parent=1 // pred_region
      %78 = dma.done [#allocation6], 256
    $region41: #{tpu_custom_call.1} parent=1 // pred_fallthru
      _
    // Predicated region
    $region42: #{tpu_custom_call.1} parent=1 // pred_check
      _
    $region43: #{tpu_custom_call.1} parent=1 // pred_check_branch
      %80 = sbr.rel (0) target = $region45
    $region44: #{tpu_custom_call.1} parent=1 // pred_region
      %81 = dma.done [#allocation6], 512
    $region45: #{tpu_custom_call.1} parent=1 // pred_fallthru
      _
    // Predicated region
    $region46: #{tpu_custom_call.1} parent=1 // pred_check
      _
    $region47: #{tpu_custom_call.1} parent=1 // pred_check_branch
      %83 = sbr.rel (0) target = $region49
    $region48: #{tpu_custom_call.1} parent=1 // pred_region
      %84 = dma.done [#allocation9], 256
    $region49: #{tpu_custom_call.1} parent=1 // pred_fallthru
      _
    %v85 = vld [vmem:[#allocation2] sm:$0xff]
    %v86 = vld [vmem:[#allocation2 + $0x8] sm:$0xff]
    %v87 = vld [vmem:[#allocation5] sm:$0xff]
    %v88 = vld [vmem:[#allocation5 + $0x8] sm:$0xff]
    %v89 = vadd.f32 %v85, %v87
    %v90 = vadd.f32 %v86, %v88
    %v91 = vld [vmem:[#allocation8] sm:$0xff]
    %v92 = vld [vmem:[#allocation8 + $0x8] sm:$0x1]
    %v93 = vld [vmem:[%s2] sm:$0xff]
    %v94 = vld [vmem:[%s2 + $0x8] sm:$0xff]
    %v95 = vld [vmem:[%s2 + $0x10] sm:$0xff]
    %v96 = vld [vmem:[%s2 + $0x18] sm:$0xff]
    %v97 = vlaneseq
    %v98 = vshrl.u32 %v97, 7
    %v99 = vsub.s32 0, %v98
    %v100 = vrot.slane %v91, %v99
    %vm101 = vcmask 261120
    %v103 = vsel %vm101, %v89, 0
    %v106 = vsel %vm101, %v90, 0
    %108 = vmatprep.subr.mxu0 0.0
    %109 = vmatpush1.msra.mxu0 0.0
    %110 = vmatprep.subr.mxu0 0.0
    %111 = vmatpush1.msra.mxu0 0.0
    %112 = vmatprep.subr.mxu0 0.0
    %113 = vmatpush1.msra.mxu0 0.0
    %114 = vmatprep.subr.mxu0 0.0
    %115 = vmatpush1.msra.mxu0 0.0
    %116 = vmatprep.subr.mxu0 0.0
    %117 = vmatpush1.msra.mxu0 0.0
    %118 = vmatprep.subr.mxu0 0.0
    %119 = vmatpush1.msra.mxu0 0.0
    %120 = vmatprep.subr.mxu0 0.0
    %121 = vmatpush1.msra.mxu0 0.0
    %122 = vmatprep.subr.mxu0 0.0
    %123 = vmatpush1.msra.mxu0 0.0
    %124 = vmatprep.subr.mxu0 0.0
    %125 = vmatpush1.msra.mxu0 0.0
    %126 = vmatprep.subr.mxu0 0.0
    %127 = vmatpush1.msra.mxu0 0.0
    %128 = vmatprep.subr.mxu0 0.0
    %129 = vmatpush1.msra.mxu0 0.0
    %130 = vmatprep.subr.mxu0 0.0
    %131 = vmatpush1.msra.mxu0 0.0
    %132 = vmatprep.subr.mxu0 0.0
    %133 = vmatpush1.msra.mxu0 %v96
    %134 = vmatprep.subr.mxu0 0.0
    %135 = vmatpush1.msra.mxu0 %v95
    %136 = vmatprep.subr.mxu0 0.0
    %137 = vmatpush1.msra.mxu0 %v94
    %138 = vmatprep.subr.mxu0 0.0
    %139 = vmatpush1.msra.mxu0 %v93
    %140 = vmatprep.subr.mxu0 0.0
    %141 = vmatpush2.msra.mxu0 0.0
    %142 = vmatprep.subr.mxu0 0.0
    %143 = vmatpush2.msra.mxu0 0.0
    %144 = vmatprep.subr.mxu0 0.0
    %145 = vmatpush2.msra.mxu0 0.0
    %146 = vmatprep.subr.mxu0 0.0
    %147 = vmatpush2.msra.mxu0 0.0
    %148 = vmatprep.subr.mxu0 0.0
    %149 = vmatpush2.msra.mxu0 0.0
    %150 = vmatprep.subr.mxu0 0.0
    %151 = vmatpush2.msra.mxu0 0.0
    %152 = vmatprep.subr.mxu0 0.0
    %153 = vmatpush2.msra.mxu0 0.0
    %154 = vmatprep.subr.mxu0 0.0
    %155 = vmatpush2.msra.mxu0 0.0
    %156 = vmatprep.subr.mxu0 0.0
    %157 = vmatpush2.msra.mxu0 0.0
    %158 = vmatprep.subr.mxu0 0.0
    %159 = vmatpush2.msra.mxu0 0.0
    %160 = vmatprep.subr.mxu0 0.0
    %161 = vmatpush2.msra.mxu0 0.0
    %162 = vmatprep.subr.mxu0 0.0
    %163 = vmatpush2.msra.mxu0 0.0
    %164 = vmatprep.subr.mxu0 0.0
    %165 = vmatpush2.msra.mxu0 0.0
    %166 = vmatprep.subr.mxu0 0.0
    %167 = vmatpush2.msra.mxu0 0.0
    %168 = vmatprep.subr.mxu0 0.0
    %169 = vmatpush2.msra.mxu0 0.0
    %170 = vmatprep.subr.mxu0 0.0
    %171 = vmatpush2.msra.mxu0 0.0
    %172 = vmatprep.mubr.f32.mxu0 0.0
    %173 = vmatmul.mubr.f32.gmra.mxu0 %v103
    %v174 = vpop.f32.mrf.mxu0
    %v175 = vadd.f32 %v100, %v174
    %v176 = vpop.f32.mrf.mxu0
    %177 = vmatprep.mubr.f32.mxu0 0.0
    %178 = vmatmul.mubr.f32.gmra.mxu0 %v106
    %v179 = vpop.f32.mrf.mxu0
    %v180 = vadd.f32 %v100, %v179
    %v181 = vpop.f32.mrf.mxu0
    %182 = vdwg.mxu0
    %v183 = vld [vmem:[%s3] sm:$0xff]
    %v184 = vld [vmem:[%s3 + $0x8] sm:$0xff]
    %v185 = vld [vmem:[%s3 + $0x10] sm:$0xff]
    %v186 = vld [vmem:[%s3 + $0x18] sm:$0xff]
    %v187 = vlaneseq
    %v188 = vshrl.u32 %v187, 7
    %v189 = vsub.s32 1, %v188
    %v190 = vrot.slane %v91, %v189
    %v192 = vsel %vm101, %v85, 0
    %v195 = vsel %vm101, %v86, 0
    %197 = vmatprep.subr.mxu0 0.0
    %198 = vmatpush1.msra.mxu0 0.0
    %199 = vmatprep.subr.mxu0 0.0
    %200 = vmatpush1.msra.mxu0 0.0
    %201 = vmatprep.subr.mxu0 0.0
    %202 = vmatpush1.msra.mxu0 0.0
    %203 = vmatprep.subr.mxu0 0.0
    %204 = vmatpush1.msra.mxu0 0.0
    %205 = vmatprep.subr.mxu0 0.0
    %206 = vmatpush1.msra.mxu0 0.0
    %207 = vmatprep.subr.mxu0 0.0
    %208 = vmatpush1.msra.mxu0 0.0
    %209 = vmatprep.subr.mxu0 0.0
    %210 = vmatpush1.msra.mxu0 0.0
    %211 = vmatprep.subr.mxu0 0.0
    %212 = vmatpush1.msra.mxu0 0.0
    %213 = vmatprep.subr.mxu0 0.0
    %214 = vmatpush1.msra.mxu0 0.0
    %215 = vmatprep.subr.mxu0 0.0
    %216 = vmatpush1.msra.mxu0 0.0
    %217 = vmatprep.subr.mxu0 0.0
    %218 = vmatpush1.msra.mxu0 0.0
    %219 = vmatprep.subr.mxu0 0.0
    %220 = vmatpush1.msra.mxu0 0.0
    %221 = vmatprep.subr.mxu0 0.0
    %222 = vmatpush1.msra.mxu0 %v186
    %223 = vmatprep.subr.mxu0 0.0
    %224 = vmatpush1.msra.mxu0 %v185
    %225 = vmatprep.subr.mxu0 0.0
    %226 = vmatpush1.msra.mxu0 %v184
    %227 = vmatprep.subr.mxu0 0.0
    %228 = vmatpush1.msra.mxu0 %v183
    %229 = vmatprep.subr.mxu0 0.0
    %230 = vmatpush2.msra.mxu0 0.0
    %231 = vmatprep.subr.mxu0 0.0
    %232 = vmatpush2.msra.mxu0 0.0
    %233 = vmatprep.subr.mxu0 0.0
    %234 = vmatpush2.msra.mxu0 0.0
    %235 = vmatprep.subr.mxu0 0.0
    %236 = vmatpush2.msra.mxu0 0.0
    %237 = vmatprep.subr.mxu0 0.0
    %238 = vmatpush2.msra.mxu0 0.0
    %239 = vmatprep.subr.mxu0 0.0
    %240 = vmatpush2.msra.mxu0 0.0
    %241 = vmatprep.subr.mxu0 0.0
    %242 = vmatpush2.msra.mxu0 0.0
    %243 = vmatprep.subr.mxu0 0.0
    %244 = vmatpush2.msra.mxu0 0.0
    %245 = vmatprep.subr.mxu0 0.0
    %246 = vmatpush2.msra.mxu0 0.0
    %247 = vmatprep.subr.mxu0 0.0
    %248 = vmatpush2.msra.mxu0 0.0
    %249 = vmatprep.subr.mxu0 0.0
    %250 = vmatpush2.msra.mxu0 0.0
    %251 = vmatprep.subr.mxu0 0.0
    %252 = vmatpush2.msra.mxu0 0.0
    %253 = vmatprep.subr.mxu0 0.0
    %254 = vmatpush2.msra.mxu0 0.0
    %255 = vmatprep.subr.mxu0 0.0
    %256 = vmatpush2.msra.mxu0 0.0
    %257 = vmatprep.subr.mxu0 0.0
    %258 = vmatpush2.msra.mxu0 0.0
    %259 = vmatprep.subr.mxu0 0.0
    %260 = vmatpush2.msra.mxu0 0.0
    %261 = vmatprep.mubr.f32.mxu0 0.0
    %262 = vmatmul.mubr.f32.gmra.mxu0 %v192
    %v263 = vpop.f32.mrf.mxu0
    %v264 = vadd.f32 %v190, %v263
    %v265 = vpop.f32.mrf.mxu0
    %266 = vmatprep.mubr.f32.mxu0 0.0
    %267 = vmatmul.mubr.f32.gmra.mxu0 %v195
    %v268 = vpop.f32.mrf.mxu0
    %v269 = vadd.f32 %v190, %v268
    %v270 = vpop.f32.mrf.mxu0
    %271 = vdwg.mxu0
    %v272 = vld [vmem:[%s4] sm:$0xff]
    %v273 = vld [vmem:[%s4 + $0x8] sm:$0xff]
    %v274 = vld [vmem:[%s4 + $0x10] sm:$0xff]
    %v275 = vld [vmem:[%s4 + $0x18] sm:$0xff]
    %277 = vrot.lane.b32.xlu0 %v175, 96
    %v278 = vpop.permute.xlu0 %277
    %vm279 = vcmask 64512
    %v280 = vsel %vm279, %v175, 0
    %v282 = vsel %vm279, %v278, 0
    %284 = vmatprep.subr.mxu0 0.0
    %285 = vmatpush1.xpose.msra.mxu0 0.0
    %286 = vmatprep.subr.mxu0 0.0
    %287 = vmatpush1.xpose.msra.mxu0 0.0
    %288 = vmatprep.subr.mxu0 0.0
    %289 = vmatpush1.xpose.msra.mxu0 0.0
    %290 = vmatprep.subr.mxu0 0.0
    %291 = vmatpush1.xpose.msra.mxu0 0.0
    %292 = vmatprep.subr.mxu0 0.0
    %293 = vmatpush1.xpose.msra.mxu0 0.0
    %294 = vmatprep.subr.mxu0 0.0
    %295 = vmatpush1.xpose.msra.mxu0 0.0
    %296 = vmatprep.subr.mxu0 0.0
    %297 = vmatpush1.xpose.msra.mxu0 0.0
    %298 = vmatprep.subr.mxu0 0.0
    %299 = vmatpush1.xpose.msra.mxu0 0.0
    %300 = vmatprep.subr.mxu0 0.0
    %301 = vmatpush1.xpose.msra.mxu0 0.0
    %302 = vmatprep.subr.mxu0 0.0
    %303 = vmatpush1.xpose.msra.mxu0 0.0
    %304 = vmatprep.subr.mxu0 0.0
    %305 = vmatpush1.xpose.msra.mxu0 0.0
    %306 = vmatprep.subr.mxu0 0.0
    %307 = vmatpush1.xpose.msra.mxu0 0.0
    %308 = vmatprep.subr.mxu0 0.0
    %309 = vmatpush1.xpose.msra.mxu0 0.0
    %310 = vmatprep.subr.mxu0 0.0
    %311 = vmatpush1.xpose.msra.mxu0 0.0
    %312 = vmatprep.subr.mxu0 0.0
    %313 = vmatpush1.xpose.msra.mxu0 0.0
    %314 = vmatprep.subr.mxu0 0.0
    %315 = vmatpush1.xpose.msra.mxu0 %v282
    %316 = vmatprep.subr.mxu0 0.0
    %317 = vmatpush2.xpose.msra.mxu0 0.0
    %318 = vmatprep.subr.mxu0 0.0
    %319 = vmatpush2.xpose.msra.mxu0 0.0
    %320 = vmatprep.subr.mxu0 0.0
    %321 = vmatpush2.xpose.msra.mxu0 0.0
    %322 = vmatprep.subr.mxu0 0.0
    %323 = vmatpush2.xpose.msra.mxu0 0.0
    %324 = vmatprep.subr.mxu0 0.0
    %325 = vmatpush2.xpose.msra.mxu0 0.0
    %326 = vmatprep.subr.mxu0 0.0
    %327 = vmatpush2.xpose.msra.mxu0 0.0
    %328 = vmatprep.subr.mxu0 0.0
    %329 = vmatpush2.xpose.msra.mxu0 0.0
    %330 = vmatprep.subr.mxu0 0.0
    %331 = vmatpush2.xpose.msra.mxu0 0.0
    %332 = vmatprep.subr.mxu0 0.0
    %333 = vmatpush2.xpose.msra.mxu0 0.0
    %334 = vmatprep.subr.mxu0 0.0
    %335 = vmatpush2.xpose.msra.mxu0 0.0
    %336 = vmatprep.subr.mxu0 0.0
    %337 = vmatpush2.xpose.msra.mxu0 0.0
    %338 = vmatprep.subr.mxu0 0.0
    %339 = vmatpush2.xpose.msra.mxu0 0.0
    %340 = vmatprep.subr.mxu0 0.0
    %341 = vmatpush2.xpose.msra.mxu0 0.0
    %342 = vmatprep.subr.mxu0 0.0
    %343 = vmatpush2.xpose.msra.mxu0 0.0
    %344 = vmatprep.subr.mxu0 0.0
    %345 = vmatpush2.xpose.msra.mxu0 0.0
    %346 = vmatprep.subr.mxu0 0.0
    %347 = vmatpush2.xpose.msra.mxu0 0.0
    %348 = vmatprep.mubr.f32.mxu0 0.0
    %349 = vmatmul.mubr.f32.gmra.mxu0 %v280
    %v350 = vpop.f32.mrf.mxu0
    %v351 = vadd.f32 0.0, %v350
    %v352 = vpop.f32.mrf.mxu0
    %353 = vdwg.mxu0
    %355 = vrot.lane.b32.xlu0 %v180, 96
    %v356 = vpop.permute.xlu0 %355
    %v357 = vsel %vm279, %v180, 0
    %v359 = vsel %vm279, %v356, 0
    %361 = vmatprep.subr.mxu0 0.0
    %362 = vmatpush1.xpose.msra.mxu0 0.0
    %363 = vmatprep.subr.mxu0 0.0
    %364 = vmatpush1.xpose.msra.mxu0 0.0
    %365 = vmatprep.subr.mxu0 0.0
    %366 = vmatpush1.xpose.msra.mxu0 0.0
    %367 = vmatprep.subr.mxu0 0.0
    %368 = vmatpush1.xpose.msra.mxu0 0.0
    %369 = vmatprep.subr.mxu0 0.0
    %370 = vmatpush1.xpose.msra.mxu0 0.0
    %371 = vmatprep.subr.mxu0 0.0
    %372 = vmatpush1.xpose.msra.mxu0 0.0
    %373 = vmatprep.subr.mxu0 0.0
    %374 = vmatpush1.xpose.msra.mxu0 0.0
    %375 = vmatprep.subr.mxu0 0.0
    %376 = vmatpush1.xpose.msra.mxu0 0.0
    %377 = vmatprep.subr.mxu0 0.0
    %378 = vmatpush1.xpose.msra.mxu0 0.0
    %379 = vmatprep.subr.mxu0 0.0
    %380 = vmatpush1.xpose.msra.mxu0 0.0
    %381 = vmatprep.subr.mxu0 0.0
    %382 = vmatpush1.xpose.msra.mxu0 0.0
    %383 = vmatprep.subr.mxu0 0.0
    %384 = vmatpush1.xpose.msra.mxu0 0.0
    %385 = vmatprep.subr.mxu0 0.0
    %386 = vmatpush1.xpose.msra.mxu0 0.0
    %387 = vmatprep.subr.mxu0 0.0
    %388 = vmatpush1.xpose.msra.mxu0 0.0
    %389 = vmatprep.subr.mxu0 0.0
    %390 = vmatpush1.xpose.msra.mxu0 0.0
    %391 = vmatprep.subr.mxu0 0.0
    %392 = vmatpush1.xpose.msra.mxu0 %v359
    %393 = vmatprep.subr.mxu0 0.0
    %394 = vmatpush2.xpose.msra.mxu0 0.0
    %395 = vmatprep.subr.mxu0 0.0
    %396 = vmatpush2.xpose.msra.mxu0 0.0
    %397 = vmatprep.subr.mxu0 0.0
    %398 = vmatpush2.xpose.msra.mxu0 0.0
    %399 = vmatprep.subr.mxu0 0.0
    %400 = vmatpush2.xpose.msra.mxu0 0.0
    %401 = vmatprep.subr.mxu0 0.0
    %402 = vmatpush2.xpose.msra.mxu0 0.0
    %403 = vmatprep.subr.mxu0 0.0
    %404 = vmatpush2.xpose.msra.mxu0 0.0
    %405 = vmatprep.subr.mxu0 0.0
    %406 = vmatpush2.xpose.msra.mxu0 0.0
    %407 = vmatprep.subr.mxu0 0.0
    %408 = vmatpush2.xpose.msra.mxu0 0.0
    %409 = vmatprep.subr.mxu0 0.0
    %410 = vmatpush2.xpose.msra.mxu0 0.0
    %411 = vmatprep.subr.mxu0 0.0
    %412 = vmatpush2.xpose.msra.mxu0 0.0
    %413 = vmatprep.subr.mxu0 0.0
    %414 = vmatpush2.xpose.msra.mxu0 0.0
    %415 = vmatprep.subr.mxu0 0.0
    %416 = vmatpush2.xpose.msra.mxu0 0.0
    %417 = vmatprep.subr.mxu0 0.0
    %418 = vmatpush2.xpose.msra.mxu0 0.0
    %419 = vmatprep.subr.mxu0 0.0
    %420 = vmatpush2.xpose.msra.mxu0 0.0
    %421 = vmatprep.subr.mxu0 0.0
    %422 = vmatpush2.xpose.msra.mxu0 0.0
    %423 = vmatprep.subr.mxu0 0.0
    %424 = vmatpush2.xpose.msra.mxu0 0.0
    %425 = vmatprep.mubr.f32.mxu0 0.0
    %426 = vmatmul.mubr.f32.gmra.mxu0 %v357
    %v427 = vpop.f32.mrf.mxu0
    %v428 = vadd.f32 0.0, %v427
    %v429 = vpop.f32.mrf.mxu0
    %430 = vdwg.mxu0
    %v431 = vsel %vm279, %v351, -inf
    %432 = vmax.xlane.f32.xlu0 %v431
    %v433 = vpop.xlane.xlu0 %432
    %v434 = vsel %vm279, %v428, -inf
    %435 = vmax.xlane.f32.xlu0 %v434
    %v436 = vpop.xlane.xlu0 %435
    %v437 = vsub.f32 %v351, %v433
    %v438 = vsub.f32 %v428, %v436
    %v439 = vmul.f32 %v437, 1.442695
    %v440 = vpow.pop %v439
    %v441 = vmul.f32 %v438, 1.442695
    %v442 = vpow.pop %v441
    %v443 = vsel %vm279, %v440, 0.0
    %444 = vadd.xlane.f32.xlu0 %v443
    %v445 = vpop.xlane.xlu0 %444
    %v446 = vsel %vm279, %v442, 0.0
    %447 = vadd.xlane.f32.xlu0 %v446
    %v448 = vpop.xlane.xlu0 %447
    %v449 = vrcp.pop %v445
    %v450 = vmul.f32 %v440, %v449
    %v451 = vrcp.pop %v448
    %v452 = vmul.f32 %v442, %v451
    %v454 = vsel %vm279, %v450, 0
    %456 = vmatprep.subr.mxu0 0.0
    %457 = vmatpush1.msra.mxu0 0.0
    %458 = vmatprep.subr.mxu0 0.0
    %459 = vmatpush1.msra.mxu0 0.0
    %460 = vmatprep.subr.mxu0 0.0
    %461 = vmatpush1.msra.mxu0 0.0
    %462 = vmatprep.subr.mxu0 0.0
    %463 = vmatpush1.msra.mxu0 0.0
    %464 = vmatprep.subr.mxu0 0.0
    %465 = vmatpush1.msra.mxu0 0.0
    %466 = vmatprep.subr.mxu0 0.0
    %467 = vmatpush1.msra.mxu0 0.0
    %468 = vmatprep.subr.mxu0 0.0
    %469 = vmatpush1.msra.mxu0 0.0
    %470 = vmatprep.subr.mxu0 0.0
    %471 = vmatpush1.msra.mxu0 0.0
    %472 = vmatprep.subr.mxu0 0.0
    %473 = vmatpush1.msra.mxu0 0.0
    %474 = vmatprep.subr.mxu0 0.0
    %475 = vmatpush1.msra.mxu0 0.0
    %476 = vmatprep.subr.mxu0 0.0
    %477 = vmatpush1.msra.mxu0 0.0
    %478 = vmatprep.subr.mxu0 0.0
    %479 = vmatpush1.msra.mxu0 0.0
    %480 = vmatprep.subr.mxu0 0.0
    %481 = vmatpush1.msra.mxu0 0.0
    %482 = vmatprep.subr.mxu0 0.0
    %483 = vmatpush1.msra.mxu0 0.0
    %484 = vmatprep.subr.mxu0 0.0
    %485 = vmatpush1.msra.mxu0 0.0
    %486 = vmatprep.subr.mxu0 0.0
    %487 = vmatpush1.msra.mxu0 %v264
    %488 = vmatprep.subr.mxu0 0.0
    %489 = vmatpush2.msra.mxu0 0.0
    %490 = vmatprep.subr.mxu0 0.0
    %491 = vmatpush2.msra.mxu0 0.0
    %492 = vmatprep.subr.mxu0 0.0
    %493 = vmatpush2.msra.mxu0 0.0
    %494 = vmatprep.subr.mxu0 0.0
    %495 = vmatpush2.msra.mxu0 0.0
    %496 = vmatprep.subr.mxu0 0.0
    %497 = vmatpush2.msra.mxu0 0.0
    %498 = vmatprep.subr.mxu0 0.0
    %499 = vmatpush2.msra.mxu0 0.0
    %500 = vmatprep.subr.mxu0 0.0
    %501 = vmatpush2.msra.mxu0 0.0
    %502 = vmatprep.subr.mxu0 0.0
    %503 = vmatpush2.msra.mxu0 0.0
    %504 = vmatprep.subr.mxu0 0.0
    %505 = vmatpush2.msra.mxu0 0.0
    %506 = vmatprep.subr.mxu0 0.0
    %507 = vmatpush2.msra.mxu0 0.0
    %508 = vmatprep.subr.mxu0 0.0
    %509 = vmatpush2.msra.mxu0 0.0
    %510 = vmatprep.subr.mxu0 0.0
    %511 = vmatpush2.msra.mxu0 0.0
    %512 = vmatprep.subr.mxu0 0.0
    %513 = vmatpush2.msra.mxu0 0.0
    %514 = vmatprep.subr.mxu0 0.0
    %515 = vmatpush2.msra.mxu0 0.0
    %516 = vmatprep.subr.mxu0 0.0
    %517 = vmatpush2.msra.mxu0 0.0
    %518 = vmatprep.subr.mxu0 0.0
    %519 = vmatpush2.msra.mxu0 0.0
    %520 = vmatprep.mubr.f32.mxu0 0.0
    %521 = vmatmul.mubr.f32.gmra.mxu0 %v454
    %v522 = vpop.f32.mrf.mxu0
    %v523 = vadd.f32 0.0, %v522
    %v524 = vpop.f32.mrf.mxu0
    %525 = vdwg.mxu0
    %v527 = vsel %vm279, %v452, 0
    %529 = vmatprep.subr.mxu0 0.0
    %530 = vmatpush1.msra.mxu0 0.0
    %531 = vmatprep.subr.mxu0 0.0
    %532 = vmatpush1.msra.mxu0 0.0
    %533 = vmatprep.subr.mxu0 0.0
    %534 = vmatpush1.msra.mxu0 0.0
    %535 = vmatprep.subr.mxu0 0.0
    %536 = vmatpush1.msra.mxu0 0.0
    %537 = vmatprep.subr.mxu0 0.0
    %538 = vmatpush1.msra.mxu0 0.0
    %539 = vmatprep.subr.mxu0 0.0
    %540 = vmatpush1.msra.mxu0 0.0
    %541 = vmatprep.subr.mxu0 0.0
    %542 = vmatpush1.msra.mxu0 0.0
    %543 = vmatprep.subr.mxu0 0.0
    %544 = vmatpush1.msra.mxu0 0.0
    %545 = vmatprep.subr.mxu0 0.0
    %546 = vmatpush1.msra.mxu0 0.0
    %547 = vmatprep.subr.mxu0 0.0
    %548 = vmatpush1.msra.mxu0 0.0
    %549 = vmatprep.subr.mxu0 0.0
    %550 = vmatpush1.msra.mxu0 0.0
    %551 = vmatprep.subr.mxu0 0.0
    %552 = vmatpush1.msra.mxu0 0.0
    %553 = vmatprep.subr.mxu0 0.0
    %554 = vmatpush1.msra.mxu0 0.0
    %555 = vmatprep.subr.mxu0 0.0
    %556 = vmatpush1.msra.mxu0 0.0
    %557 = vmatprep.subr.mxu0 0.0
    %558 = vmatpush1.msra.mxu0 0.0
    %559 = vmatprep.subr.mxu0 0.0
    %560 = vmatpush1.msra.mxu0 %v269
    %561 = vmatprep.subr.mxu0 0.0
    %562 = vmatpush2.msra.mxu0 0.0
    %563 = vmatprep.subr.mxu0 0.0
    %564 = vmatpush2.msra.mxu0 0.0
    %565 = vmatprep.subr.mxu0 0.0
    %566 = vmatpush2.msra.mxu0 0.0
    %567 = vmatprep.subr.mxu0 0.0
    %568 = vmatpush2.msra.mxu0 0.0
    %569 = vmatprep.subr.mxu0 0.0
    %570 = vmatpush2.msra.mxu0 0.0
    %571 = vmatprep.subr.mxu0 0.0
    %572 = vmatpush2.msra.mxu0 0.0
    %573 = vmatprep.subr.mxu0 0.0
    %574 = vmatpush2.msra.mxu0 0.0
    %575 = vmatprep.subr.mxu0 0.0
    %576 = vmatpush2.msra.mxu0 0.0
    %577 = vmatprep.subr.mxu0 0.0
    %578 = vmatpush2.msra.mxu0 0.0
    %579 = vmatprep.subr.mxu0 0.0
    %580 = vmatpush2.msra.mxu0 0.0
    %581 = vmatprep.subr.mxu0 0.0
    %582 = vmatpush2.msra.mxu0 0.0
    %583 = vmatprep.subr.mxu0 0.0
    %584 = vmatpush2.msra.mxu0 0.0
    %585 = vmatprep.subr.mxu0 0.0
    %586 = vmatpush2.msra.mxu0 0.0
    %587 = vmatprep.subr.mxu0 0.0
    %588 = vmatpush2.msra.mxu0 0.0
    %589 = vmatprep.subr.mxu0 0.0
    %590 = vmatpush2.msra.mxu0 0.0
    %591 = vmatprep.subr.mxu0 0.0
    %592 = vmatpush2.msra.mxu0 0.0
    %593 = vmatprep.mubr.f32.mxu0 0.0
    %594 = vmatmul.mubr.f32.gmra.mxu0 %v527
    %v595 = vpop.f32.mrf.mxu0
    %v596 = vadd.f32 0.0, %v595
    %v597 = vpop.f32.mrf.mxu0
    %598 = vdwg.mxu0
    %599 = vrot.lane.b32.xlu0 %v175, 120
    %v600 = vpop.permute.xlu0 %599
    %601 = vrot.lane.b32.xlu0 %v175, 88
    %v602 = vpop.permute.xlu0 %601
    %v603 = vsel %vm279, %v600, 0
    %v605 = vsel %vm279, %v602, 0
    %607 = vmatprep.subr.mxu0 0.0
    %608 = vmatpush1.xpose.msra.mxu0 0.0
    %609 = vmatprep.subr.mxu0 0.0
    %610 = vmatpush1.xpose.msra.mxu0 0.0
    %611 = vmatprep.subr.mxu0 0.0
    %612 = vmatpush1.xpose.msra.mxu0 0.0
    %613 = vmatprep.subr.mxu0 0.0
    %614 = vmatpush1.xpose.msra.mxu0 0.0
    %615 = vmatprep.subr.mxu0 0.0
    %616 = vmatpush1.xpose.msra.mxu0 0.0
    %617 = vmatprep.subr.mxu0 0.0
    %618 = vmatpush1.xpose.msra.mxu0 0.0
    %619 = vmatprep.subr.mxu0 0.0
    %620 = vmatpush1.xpose.msra.mxu0 0.0
    %621 = vmatprep.subr.mxu0 0.0
    %622 = vmatpush1.xpose.msra.mxu0 0.0
    %623 = vmatprep.subr.mxu0 0.0
    %624 = vmatpush1.xpose.msra.mxu0 0.0
    %625 = vmatprep.subr.mxu0 0.0
    %626 = vmatpush1.xpose.msra.mxu0 0.0
    %627 = vmatprep.subr.mxu0 0.0
    %628 = vmatpush1.xpose.msra.mxu0 0.0
    %629 = vmatprep.subr.mxu0 0.0
    %630 = vmatpush1.xpose.msra.mxu0 0.0
    %631 = vmatprep.subr.mxu0 0.0
    %632 = vmatpush1.xpose.msra.mxu0 0.0
    %633 = vmatprep.subr.mxu0 0.0
    %634 = vmatpush1.xpose.msra.mxu0 0.0
    %635 = vmatprep.subr.mxu0 0.0
    %636 = vmatpush1.xpose.msra.mxu0 0.0
    %637 = vmatprep.subr.mxu0 0.0
    %638 = vmatpush1.xpose.msra.mxu0 %v605
    %639 = vmatprep.subr.mxu0 0.0
    %640 = vmatpush2.xpose.msra.mxu0 0.0
    %641 = vmatprep.subr.mxu0 0.0
    %642 = vmatpush2.xpose.msra.mxu0 0.0
    %643 = vmatprep.subr.mxu0 0.0
    %644 = vmatpush2.xpose.msra.mxu0 0.0
    %645 = vmatprep.subr.mxu0 0.0
    %646 = vmatpush2.xpose.msra.mxu0 0.0
    %647 = vmatprep.subr.mxu0 0.0
    %648 = vmatpush2.xpose.msra.mxu0 0.0
    %649 = vmatprep.subr.mxu0 0.0
    %650 = vmatpush2.xpose.msra.mxu0 0.0
    %651 = vmatprep.subr.mxu0 0.0
    %652 = vmatpush2.xpose.msra.mxu0 0.0
    %653 = vmatprep.subr.mxu0 0.0
    %654 = vmatpush2.xpose.msra.mxu0 0.0
    %655 = vmatprep.subr.mxu0 0.0
    %656 = vmatpush2.xpose.msra.mxu0 0.0
    %657 = vmatprep.subr.mxu0 0.0
    %658 = vmatpush2.xpose.msra.mxu0 0.0
    %659 = vmatprep.subr.mxu0 0.0
    %660 = vmatpush2.xpose.msra.mxu0 0.0
    %661 = vmatprep.subr.mxu0 0.0
    %662 = vmatpush2.xpose.msra.mxu0 0.0
    %663 = vmatprep.subr.mxu0 0.0
    %664 = vmatpush2.xpose.msra.mxu0 0.0
    %665 = vmatprep.subr.mxu0 0.0
    %666 = vmatpush2.xpose.msra.mxu0 0.0
    %667 = vmatprep.subr.mxu0 0.0
    %668 = vmatpush2.xpose.msra.mxu0 0.0
    %669 = vmatprep.subr.mxu0 0.0
    %670 = vmatpush2.xpose.msra.mxu0 0.0
    %671 = vmatprep.mubr.f32.mxu0 0.0
    %672 = vmatmul.mubr.f32.gmra.mxu0 %v603
    %v673 = vpop.f32.mrf.mxu0
    %v674 = vadd.f32 0.0, %v673
    %v675 = vpop.f32.mrf.mxu0
    %676 = vdwg.mxu0
    %677 = vrot.lane.b32.xlu0 %v180, 120
    %v678 = vpop.permute.xlu0 %677
    %679 = vrot.lane.b32.xlu0 %v180, 88
    %v680 = vpop.permute.xlu0 %679
    %v681 = vsel %vm279, %v678, 0
    %v683 = vsel %vm279, %v680, 0
    %685 = vmatprep.subr.mxu0 0.0
    %686 = vmatpush1.xpose.msra.mxu0 0.0
    %687 = vmatprep.subr.mxu0 0.0
    %688 = vmatpush1.xpose.msra.mxu0 0.0
    %689 = vmatprep.subr.mxu0 0.0
    %690 = vmatpush1.xpose.msra.mxu0 0.0
    %691 = vmatprep.subr.mxu0 0.0
    %692 = vmatpush1.xpose.msra.mxu0 0.0
    %693 = vmatprep.subr.mxu0 0.0
    %694 = vmatpush1.xpose.msra.mxu0 0.0
    %695 = vmatprep.subr.mxu0 0.0
    %696 = vmatpush1.xpose.msra.mxu0 0.0
    %697 = vmatprep.subr.mxu0 0.0
    %698 = vmatpush1.xpose.msra.mxu0 0.0
    %699 = vmatprep.subr.mxu0 0.0
    %700 = vmatpush1.xpose.msra.mxu0 0.0
    %701 = vmatprep.subr.mxu0 0.0
    %702 = vmatpush1.xpose.msra.mxu0 0.0
    %703 = vmatprep.subr.mxu0 0.0
    %704 = vmatpush1.xpose.msra.mxu0 0.0
    %705 = vmatprep.subr.mxu0 0.0
    %706 = vmatpush1.xpose.msra.mxu0 0.0
    %707 = vmatprep.subr.mxu0 0.0
    %708 = vmatpush1.xpose.msra.mxu0 0.0
    %709 = vmatprep.subr.mxu0 0.0
    %710 = vmatpush1.xpose.msra.mxu0 0.0
    %711 = vmatprep.subr.mxu0 0.0
    %712 = vmatpush1.xpose.msra.mxu0 0.0
    %713 = vmatprep.subr.mxu0 0.0
    %714 = vmatpush1.xpose.msra.mxu0 0.0
    %715 = vmatprep.subr.mxu0 0.0
    %716 = vmatpush1.xpose.msra.mxu0 %v683
    %717 = vmatprep.subr.mxu0 0.0
    %718 = vmatpush2.xpose.msra.mxu0 0.0
    %719 = vmatprep.subr.mxu0 0.0
    %720 = vmatpush2.xpose.msra.mxu0 0.0
    %721 = vmatprep.subr.mxu0 0.0
    %722 = vmatpush2.xpose.msra.mxu0 0.0
    %723 = vmatprep.subr.mxu0 0.0
    %724 = vmatpush2.xpose.msra.mxu0 0.0
    %725 = vmatprep.subr.mxu0 0.0
    %726 = vmatpush2.xpose.msra.mxu0 0.0
    %727 = vmatprep.subr.mxu0 0.0
    %728 = vmatpush2.xpose.msra.mxu0 0.0
    %729 = vmatprep.subr.mxu0 0.0
    %730 = vmatpush2.xpose.msra.mxu0 0.0
    %731 = vmatprep.subr.mxu0 0.0
    %732 = vmatpush2.xpose.msra.mxu0 0.0
    %733 = vmatprep.subr.mxu0 0.0
    %734 = vmatpush2.xpose.msra.mxu0 0.0
    %735 = vmatprep.subr.mxu0 0.0
    %736 = vmatpush2.xpose.msra.mxu0 0.0
    %737 = vmatprep.subr.mxu0 0.0
    %738 = vmatpush2.xpose.msra.mxu0 0.0
    %739 = vmatprep.subr.mxu0 0.0
    %740 = vmatpush2.xpose.msra.mxu0 0.0
    %741 = vmatprep.subr.mxu0 0.0
    %742 = vmatpush2.xpose.msra.mxu0 0.0
    %743 = vmatprep.subr.mxu0 0.0
    %744 = vmatpush2.xpose.msra.mxu0 0.0
    %745 = vmatprep.subr.mxu0 0.0
    %746 = vmatpush2.xpose.msra.mxu0 0.0
    %747 = vmatprep.subr.mxu0 0.0
    %748 = vmatpush2.xpose.msra.mxu0 0.0
    %749 = vmatprep.mubr.f32.mxu0 0.0
    %750 = vmatmul.mubr.f32.gmra.mxu0 %v681
    %v751 = vpop.f32.mrf.mxu0
    %v752 = vadd.f32 0.0, %v751
    %v753 = vpop.f32.mrf.mxu0
    %754 = vdwg.mxu0
    %v755 = vsel %vm279, %v674, -inf
    %756 = vmax.xlane.f32.xlu0 %v755
    %v757 = vpop.xlane.xlu0 %756
    %v758 = vsel %vm279, %v752, -inf
    %759 = vmax.xlane.f32.xlu0 %v758
    %v760 = vpop.xlane.xlu0 %759
    %v761 = vsub.f32 %v674, %v757
    %v762 = vsub.f32 %v752, %v760
    %v763 = vmul.f32 %v761, 1.442695
    %v764 = vpow.pop %v763
    %v765 = vmul.f32 %v762, 1.442695
    %v766 = vpow.pop %v765
    %v767 = vsel %vm279, %v764, 0.0
    %768 = vadd.xlane.f32.xlu0 %v767
    %v769 = vpop.xlane.xlu0 %768
    %v770 = vsel %vm279, %v766, 0.0
    %771 = vadd.xlane.f32.xlu0 %v770
    %v772 = vpop.xlane.xlu0 %771
    %v773 = vrcp.pop %v769
    %v774 = vmul.f32 %v764, %v773
    %v775 = vrcp.pop %v772
    %v776 = vmul.f32 %v766, %v775
    %778 = vrot.lane.b32.xlu0 %v264, 120
    %v779 = vpop.permute.xlu0 %778
    %v782 = vsel %vm279, %v774, 0
    %784 = vmatprep.subr.mxu0 0.0
    %785 = vmatpush1.msra.mxu0 0.0
    %786 = vmatprep.subr.mxu0 0.0
    %787 = vmatpush1.msra.mxu0 0.0
    %788 = vmatprep.subr.mxu0 0.0
    %789 = vmatpush1.msra.mxu0 0.0
    %790 = vmatprep.subr.mxu0 0.0
    %791 = vmatpush1.msra.mxu0 0.0
    %792 = vmatprep.subr.mxu0 0.0
    %793 = vmatpush1.msra.mxu0 0.0
    %794 = vmatprep.subr.mxu0 0.0
    %795 = vmatpush1.msra.mxu0 0.0
    %796 = vmatprep.subr.mxu0 0.0
    %797 = vmatpush1.msra.mxu0 0.0
    %798 = vmatprep.subr.mxu0 0.0
    %799 = vmatpush1.msra.mxu0 0.0
    %800 = vmatprep.subr.mxu0 0.0
    %801 = vmatpush1.msra.mxu0 0.0
    %802 = vmatprep.subr.mxu0 0.0
    %803 = vmatpush1.msra.mxu0 0.0
    %804 = vmatprep.subr.mxu0 0.0
    %805 = vmatpush1.msra.mxu0 0.0
    %806 = vmatprep.subr.mxu0 0.0
    %807 = vmatpush1.msra.mxu0 0.0
    %808 = vmatprep.subr.mxu0 0.0
    %809 = vmatpush1.msra.mxu0 0.0
    %810 = vmatprep.subr.mxu0 0.0
    %811 = vmatpush1.msra.mxu0 0.0
    %812 = vmatprep.subr.mxu0 0.0
    %813 = vmatpush1.msra.mxu0 0.0
    %814 = vmatprep.subr.mxu0 0.0
    %815 = vmatpush1.msra.mxu0 %v779
    %816 = vmatprep.subr.mxu0 0.0
    %817 = vmatpush2.msra.mxu0 0.0
    %818 = vmatprep.subr.mxu0 0.0
    %819 = vmatpush2.msra.mxu0 0.0
    %820 = vmatprep.subr.mxu0 0.0
    %821 = vmatpush2.msra.mxu0 0.0
    %822 = vmatprep.subr.mxu0 0.0
    %823 = vmatpush2.msra.mxu0 0.0
    %824 = vmatprep.subr.mxu0 0.0
    %825 = vmatpush2.msra.mxu0 0.0
    %826 = vmatprep.subr.mxu0 0.0
    %827 = vmatpush2.msra.mxu0 0.0
    %828 = vmatprep.subr.mxu0 0.0
    %829 = vmatpush2.msra.mxu0 0.0
    %830 = vmatprep.subr.mxu0 0.0
    %831 = vmatpush2.msra.mxu0 0.0
    %832 = vmatprep.subr.mxu0 0.0
    %833 = vmatpush2.msra.mxu0 0.0
    %834 = vmatprep.subr.mxu0 0.0
    %835 = vmatpush2.msra.mxu0 0.0
    %836 = vmatprep.subr.mxu0 0.0
    %837 = vmatpush2.msra.mxu0 0.0
    %838 = vmatprep.subr.mxu0 0.0
    %839 = vmatpush2.msra.mxu0 0.0
    %840 = vmatprep.subr.mxu0 0.0
    %841 = vmatpush2.msra.mxu0 0.0
    %842 = vmatprep.subr.mxu0 0.0
    %843 = vmatpush2.msra.mxu0 0.0
    %844 = vmatprep.subr.mxu0 0.0
    %845 = vmatpush2.msra.mxu0 0.0
    %846 = vmatprep.subr.mxu0 0.0
    %847 = vmatpush2.msra.mxu0 0.0
    %848 = vmatprep.mubr.f32.mxu0 0.0
    %849 = vmatmul.mubr.f32.gmra.mxu0 %v782
    %v850 = vpop.f32.mrf.mxu0
    %v851 = vadd.f32 0.0, %v850
    %v852 = vpop.f32.mrf.mxu0
    %853 = vdwg.mxu0
    %855 = vrot.lane.b32.xlu0 %v269, 120
    %v856 = vpop.permute.xlu0 %855
    %v859 = vsel %vm279, %v776, 0
    %861 = vmatprep.subr.mxu0 0.0
    %862 = vmatpush1.msra.mxu0 0.0
    %863 = vmatprep.subr.mxu0 0.0
    %864 = vmatpush1.msra.mxu0 0.0
    %865 = vmatprep.subr.mxu0 0.0
    %866 = vmatpush1.msra.mxu0 0.0
    %867 = vmatprep.subr.mxu0 0.0
    %868 = vmatpush1.msra.mxu0 0.0
    %869 = vmatprep.subr.mxu0 0.0
    %870 = vmatpush1.msra.mxu0 0.0
    %871 = vmatprep.subr.mxu0 0.0
    %872 = vmatpush1.msra.mxu0 0.0
    %873 = vmatprep.subr.mxu0 0.0
    %874 = vmatpush1.msra.mxu0 0.0
    %875 = vmatprep.subr.mxu0 0.0
    %876 = vmatpush1.msra.mxu0 0.0
    %877 = vmatprep.subr.mxu0 0.0
    %878 = vmatpush1.msra.mxu0 0.0
    %879 = vmatprep.subr.mxu0 0.0
    %880 = vmatpush1.msra.mxu0 0.0
    %881 = vmatprep.subr.mxu0 0.0
    %882 = vmatpush1.msra.mxu0 0.0
    %883 = vmatprep.subr.mxu0 0.0
    %884 = vmatpush1.msra.mxu0 0.0
    %885 = vmatprep.subr.mxu0 0.0
    %886 = vmatpush1.msra.mxu0 0.0
    %887 = vmatprep.subr.mxu0 0.0
    %888 = vmatpush1.msra.mxu0 0.0
    %889 = vmatprep.subr.mxu0 0.0
    %890 = vmatpush1.msra.mxu0 0.0
    %891 = vmatprep.subr.mxu0 0.0
    %892 = vmatpush1.msra.mxu0 %v856
    %893 = vmatprep.subr.mxu0 0.0
    %894 = vmatpush2.msra.mxu0 0.0
    %895 = vmatprep.subr.mxu0 0.0
    %896 = vmatpush2.msra.mxu0 0.0
    %897 = vmatprep.subr.mxu0 0.0
    %898 = vmatpush2.msra.mxu0 0.0
    %899 = vmatprep.subr.mxu0 0.0
    %900 = vmatpush2.msra.mxu0 0.0
    %901 = vmatprep.subr.mxu0 0.0
    %902 = vmatpush2.msra.mxu0 0.0
    %903 = vmatprep.subr.mxu0 0.0
    %904 = vmatpush2.msra.mxu0 0.0
    %905 = vmatprep.subr.mxu0 0.0
    %906 = vmatpush2.msra.mxu0 0.0
    %907 = vmatprep.subr.mxu0 0.0
    %908 = vmatpush2.msra.mxu0 0.0
    %909 = vmatprep.subr.mxu0 0.0
    %910 = vmatpush2.msra.mxu0 0.0
    %911 = vmatprep.subr.mxu0 0.0
    %912 = vmatpush2.msra.mxu0 0.0
    %913 = vmatprep.subr.mxu0 0.0
    %914 = vmatpush2.msra.mxu0 0.0
    %915 = vmatprep.subr.mxu0 0.0
    %916 = vmatpush2.msra.mxu0 0.0
    %917 = vmatprep.subr.mxu0 0.0
    %918 = vmatpush2.msra.mxu0 0.0
    %919 = vmatprep.subr.mxu0 0.0
    %920 = vmatpush2.msra.mxu0 0.0
    %921 = vmatprep.subr.mxu0 0.0
    %922 = vmatpush2.msra.mxu0 0.0
    %923 = vmatprep.subr.mxu0 0.0
    %924 = vmatpush2.msra.mxu0 0.0
    %925 = vmatprep.mubr.f32.mxu0 0.0
    %926 = vmatmul.mubr.f32.gmra.mxu0 %v859
    %v927 = vpop.f32.mrf.mxu0
    %v928 = vadd.f32 0.0, %v927
    %v929 = vpop.f32.mrf.mxu0
    %930 = vdwg.mxu0
    %v932 = vsel %vm279, %v851, 0
    %v935 = vsel %vm279, %v928, 0
    %937 = vmatprep.subr.mxu0 0.0
    %938 = vmatpush1.msra.mxu0 0.0
    %939 = vmatprep.subr.mxu0 0.0
    %940 = vmatpush1.msra.mxu0 0.0
    %941 = vmatprep.subr.mxu0 0.0
    %942 = vmatpush1.msra.mxu0 0.0
    %943 = vmatprep.subr.mxu0 0.0
    %944 = vmatpush1.msra.mxu0 0.0
    %945 = vmatprep.subr.mxu0 0.0
    %946 = vmatpush1.msra.mxu0 0.0
    %947 = vmatprep.subr.mxu0 0.0
    %948 = vmatpush1.msra.mxu0 0.0
    %949 = vmatprep.subr.mxu0 0.0
    %950 = vmatpush1.msra.mxu0 0.0
    %951 = vmatprep.subr.mxu0 0.0
    %952 = vmatpush1.msra.mxu0 0.0
    %953 = vmatprep.subr.mxu0 0.0
    %954 = vmatpush1.msra.mxu0 0.0
    %955 = vmatprep.subr.mxu0 0.0
    %956 = vmatpush1.msra.mxu0 0.0
    %957 = vmatprep.subr.mxu0 0.0
    %958 = vmatpush1.msra.mxu0 0.0
    %959 = vmatprep.subr.mxu0 0.0
    %960 = vmatpush1.msra.mxu0 0.0
    %961 = vmatprep.subr.mxu0 0.0
    %962 = vmatpush1.msra.mxu0 0.0
    %963 = vmatprep.subr.mxu0 0.0
    %964 = vmatpush1.msra.mxu0 0.0
    %965 = vmatprep.subr.mxu0 0.0
    %966 = vmatpush1.msra.mxu0 0.0
    %967 = vmatprep.subr.mxu0 0.0
    %968 = vmatpush1.msra.mxu0 %v273
    %969 = vmatprep.subr.mxu0 0.0
    %970 = vmatpush2.msra.mxu0 0.0
    %971 = vmatprep.subr.mxu0 0.0
    %972 = vmatpush2.msra.mxu0 0.0
    %973 = vmatprep.subr.mxu0 0.0
    %974 = vmatpush2.msra.mxu0 0.0
    %975 = vmatprep.subr.mxu0 0.0
    %976 = vmatpush2.msra.mxu0 0.0
    %977 = vmatprep.subr.mxu0 0.0
    %978 = vmatpush2.msra.mxu0 0.0
    %979 = vmatprep.subr.mxu0 0.0
    %980 = vmatpush2.msra.mxu0 0.0
    %981 = vmatprep.subr.mxu0 0.0
    %982 = vmatpush2.msra.mxu0 0.0
    %983 = vmatprep.subr.mxu0 0.0
    %984 = vmatpush2.msra.mxu0 0.0
    %985 = vmatprep.subr.mxu0 0.0
    %986 = vmatpush2.msra.mxu0 0.0
    %987 = vmatprep.subr.mxu0 0.0
    %988 = vmatpush2.msra.mxu0 0.0
    %989 = vmatprep.subr.mxu0 0.0
    %990 = vmatpush2.msra.mxu0 0.0
    %991 = vmatprep.subr.mxu0 0.0
    %992 = vmatpush2.msra.mxu0 0.0
    %993 = vmatprep.subr.mxu0 0.0
    %994 = vmatpush2.msra.mxu0 0.0
    %995 = vmatprep.subr.mxu0 0.0
    %996 = vmatpush2.msra.mxu0 0.0
    %997 = vmatprep.subr.mxu0 0.0
    %998 = vmatpush2.msra.mxu0 0.0
    %999 = vmatprep.subr.mxu0 0.0
    %1000 = vmatpush2.msra.mxu0 0.0
    %1001 = vmatprep.mubr.f32.mxu0 0.0
    %1002 = vmatmul.mubr.f32.gmra.mxu0 %v932
    %v1003 = vpop.f32.mrf.mxu0
    %v1004 = vadd.f32 0.0, %v1003
    %v1005 = vpop.f32.mrf.mxu0
    %1006 = vmatprep.mubr.f32.mxu0 0.0
    %1007 = vmatmul.mubr.f32.gmra.mxu0 %v935
    %v1008 = vpop.f32.mrf.mxu0
    %v1009 = vadd.f32 0.0, %v1008
    %v1010 = vpop.f32.mrf.mxu0
    %1011 = vdwg.mxu0
    %v1013 = vsel %vm279, %v523, 0
    %v1016 = vsel %vm279, %v596, 0
    %1018 = vmatprep.subr.mxu0 0.0
    %1019 = vmatpush1.msra.mxu0 0.0
    %1020 = vmatprep.subr.mxu0 0.0
    %1021 = vmatpush1.msra.mxu0 0.0
    %1022 = vmatprep.subr.mxu0 0.0
    %1023 = vmatpush1.msra.mxu0 0.0
    %1024 = vmatprep.subr.mxu0 0.0
    %1025 = vmatpush1.msra.mxu0 0.0
    %1026 = vmatprep.subr.mxu0 0.0
    %1027 = vmatpush1.msra.mxu0 0.0
    %1028 = vmatprep.subr.mxu0 0.0
    %1029 = vmatpush1.msra.mxu0 0.0
    %1030 = vmatprep.subr.mxu0 0.0
    %1031 = vmatpush1.msra.mxu0 0.0
    %1032 = vmatprep.subr.mxu0 0.0
    %1033 = vmatpush1.msra.mxu0 0.0
    %1034 = vmatprep.subr.mxu0 0.0
    %1035 = vmatpush1.msra.mxu0 0.0
    %1036 = vmatprep.subr.mxu0 0.0
    %1037 = vmatpush1.msra.mxu0 0.0
    %1038 = vmatprep.subr.mxu0 0.0
    %1039 = vmatpush1.msra.mxu0 0.0
    %1040 = vmatprep.subr.mxu0 0.0
    %1041 = vmatpush1.msra.mxu0 0.0
    %1042 = vmatprep.subr.mxu0 0.0
    %1043 = vmatpush1.msra.mxu0 0.0
    %1044 = vmatprep.subr.mxu0 0.0
    %1045 = vmatpush1.msra.mxu0 0.0
    %1046 = vmatprep.subr.mxu0 0.0
    %1047 = vmatpush1.msra.mxu0 0.0
    %1048 = vmatprep.subr.mxu0 0.0
    %1049 = vmatpush1.msra.mxu0 %v272
    %1050 = vmatprep.subr.mxu0 0.0
    %1051 = vmatpush2.msra.mxu0 0.0
    %1052 = vmatprep.subr.mxu0 0.0
    %1053 = vmatpush2.msra.mxu0 0.0
    %1054 = vmatprep.subr.mxu0 0.0
    %1055 = vmatpush2.msra.mxu0 0.0
    %1056 = vmatprep.subr.mxu0 0.0
    %1057 = vmatpush2.msra.mxu0 0.0
    %1058 = vmatprep.subr.mxu0 0.0
    %1059 = vmatpush2.msra.mxu0 0.0
    %1060 = vmatprep.subr.mxu0 0.0
    %1061 = vmatpush2.msra.mxu0 0.0
    %1062 = vmatprep.subr.mxu0 0.0
    %1063 = vmatpush2.msra.mxu0 0.0
    %1064 = vmatprep.subr.mxu0 0.0
    %1065 = vmatpush2.msra.mxu0 0.0
    %1066 = vmatprep.subr.mxu0 0.0
    %1067 = vmatpush2.msra.mxu0 0.0
    %1068 = vmatprep.subr.mxu0 0.0
    %1069 = vmatpush2.msra.mxu0 0.0
    %1070 = vmatprep.subr.mxu0 0.0
    %1071 = vmatpush2.msra.mxu0 0.0
    %1072 = vmatprep.subr.mxu0 0.0
    %1073 = vmatpush2.msra.mxu0 0.0
    %1074 = vmatprep.subr.mxu0 0.0
    %1075 = vmatpush2.msra.mxu0 0.0
    %1076 = vmatprep.subr.mxu0 0.0
    %1077 = vmatpush2.msra.mxu0 0.0
    %1078 = vmatprep.subr.mxu0 0.0
    %1079 = vmatpush2.msra.mxu0 0.0
    %1080 = vmatprep.subr.mxu0 0.0
    %1081 = vmatpush2.msra.mxu0 0.0
    %1082 = vmatprep.mubr.f32.mxu0 0.0
    %1083 = vmatmul.mubr.f32.gmra.mxu0 %v1013
    %v1084 = vpop.f32.mrf.mxu0
    %v1085 = vadd.f32 %v1004, %v1084
    %v1086 = vpop.f32.mrf.mxu0
    %1087 = vmatprep.mubr.f32.mxu0 0.0
    %1088 = vmatmul.mubr.f32.gmra.mxu0 %v1016
    %v1089 = vpop.f32.mrf.mxu0
    %v1090 = vadd.f32 %v1009, %v1089
    %v1091 = vpop.f32.mrf.mxu0
    %1092 = vdwg.mxu0
    %1093 = vrot.lane.b32.xlu0 %v175, 112
    %v1094 = vpop.permute.xlu0 %1093
    %1095 = vrot.lane.b32.xlu0 %v175, 80
    %v1096 = vpop.permute.xlu0 %1095
    %v1097 = vsel %vm279, %v1094, 0
    %v1099 = vsel %vm279, %v1096, 0
    %1101 = vmatprep.subr.mxu0 0.0
    %1102 = vmatpush1.xpose.msra.mxu0 0.0
    %1103 = vmatprep.subr.mxu0 0.0
    %1104 = vmatpush1.xpose.msra.mxu0 0.0
    %1105 = vmatprep.subr.mxu0 0.0
    %1106 = vmatpush1.xpose.msra.mxu0 0.0
    %1107 = vmatprep.subr.mxu0 0.0
    %1108 = vmatpush1.xpose.msra.mxu0 0.0
    %1109 = vmatprep.subr.mxu0 0.0
    %1110 = vmatpush1.xpose.msra.mxu0 0.0
    %1111 = vmatprep.subr.mxu0 0.0
    %1112 = vmatpush1.xpose.msra.mxu0 0.0
    %1113 = vmatprep.subr.mxu0 0.0
    %1114 = vmatpush1.xpose.msra.mxu0 0.0
    %1115 = vmatprep.subr.mxu0 0.0
    %1116 = vmatpush1.xpose.msra.mxu0 0.0
    %1117 = vmatprep.subr.mxu0 0.0
    %1118 = vmatpush1.xpose.msra.mxu0 0.0
    %1119 = vmatprep.subr.mxu0 0.0
    %1120 = vmatpush1.xpose.msra.mxu0 0.0
    %1121 = vmatprep.subr.mxu0 0.0
    %1122 = vmatpush1.xpose.msra.mxu0 0.0
    %1123 = vmatprep.subr.mxu0 0.0
    %1124 = vmatpush1.xpose.msra.mxu0 0.0
    %1125 = vmatprep.subr.mxu0 0.0
    %1126 = vmatpush1.xpose.msra.mxu0 0.0
    %1127 = vmatprep.subr.mxu0 0.0
    %1128 = vmatpush1.xpose.msra.mxu0 0.0
    %1129 = vmatprep.subr.mxu0 0.0
    %1130 = vmatpush1.xpose.msra.mxu0 0.0
    %1131 = vmatprep.subr.mxu0 0.0
    %1132 = vmatpush1.xpose.msra.mxu0 %v1099
    %1133 = vmatprep.subr.mxu0 0.0
    %1134 = vmatpush2.xpose.msra.mxu0 0.0
    %1135 = vmatprep.subr.mxu0 0.0
    %1136 = vmatpush2.xpose.msra.mxu0 0.0
    %1137 = vmatprep.subr.mxu0 0.0
    %1138 = vmatpush2.xpose.msra.mxu0 0.0
    %1139 = vmatprep.subr.mxu0 0.0
    %1140 = vmatpush2.xpose.msra.mxu0 0.0
    %1141 = vmatprep.subr.mxu0 0.0
    %1142 = vmatpush2.xpose.msra.mxu0 0.0
    %1143 = vmatprep.subr.mxu0 0.0
    %1144 = vmatpush2.xpose.msra.mxu0 0.0
    %1145 = vmatprep.subr.mxu0 0.0
    %1146 = vmatpush2.xpose.msra.mxu0 0.0
    %1147 = vmatprep.subr.mxu0 0.0
    %1148 = vmatpush2.xpose.msra.mxu0 0.0
    %1149 = vmatprep.subr.mxu0 0.0
    %1150 = vmatpush2.xpose.msra.mxu0 0.0
    %1151 = vmatprep.subr.mxu0 0.0
    %1152 = vmatpush2.xpose.msra.mxu0 0.0
    %1153 = vmatprep.subr.mxu0 0.0
    %1154 = vmatpush2.xpose.msra.mxu0 0.0
    %1155 = vmatprep.subr.mxu0 0.0
    %1156 = vmatpush2.xpose.msra.mxu0 0.0
    %1157 = vmatprep.subr.mxu0 0.0
    %1158 = vmatpush2.xpose.msra.mxu0 0.0
    %1159 = vmatprep.subr.mxu0 0.0
    %1160 = vmatpush2.xpose.msra.mxu0 0.0
    %1161 = vmatprep.subr.mxu0 0.0
    %1162 = vmatpush2.xpose.msra.mxu0 0.0
    %1163 = vmatprep.subr.mxu0 0.0
    %1164 = vmatpush2.xpose.msra.mxu0 0.0
    %1165 = vmatprep.mubr.f32.mxu0 0.0
    %1166 = vmatmul.mubr.f32.gmra.mxu0 %v1097
    %v1167 = vpop.f32.mrf.mxu0
    %v1168 = vadd.f32 0.0, %v1167
    %v1169 = vpop.f32.mrf.mxu0
    %1170 = vdwg.mxu0
    %1171 = vrot.lane.b32.xlu0 %v180, 112
    %v1172 = vpop.permute.xlu0 %1171
    %1173 = vrot.lane.b32.xlu0 %v180, 80
    %v1174 = vpop.permute.xlu0 %1173
    %v1175 = vsel %vm279, %v1172, 0
    %v1177 = vsel %vm279, %v1174, 0
    %1179 = vmatprep.subr.mxu0 0.0
    %1180 = vmatpush1.xpose.msra.mxu0 0.0
    %1181 = vmatprep.subr.mxu0 0.0
    %1182 = vmatpush1.xpose.msra.mxu0 0.0
    %1183 = vmatprep.subr.mxu0 0.0
    %1184 = vmatpush1.xpose.msra.mxu0 0.0
    %1185 = vmatprep.subr.mxu0 0.0
    %1186 = vmatpush1.xpose.msra.mxu0 0.0
    %1187 = vmatprep.subr.mxu0 0.0
    %1188 = vmatpush1.xpose.msra.mxu0 0.0
    %1189 = vmatprep.subr.mxu0 0.0
    %1190 = vmatpush1.xpose.msra.mxu0 0.0
    %1191 = vmatprep.subr.mxu0 0.0
    %1192 = vmatpush1.xpose.msra.mxu0 0.0
    %1193 = vmatprep.subr.mxu0 0.0
    %1194 = vmatpush1.xpose.msra.mxu0 0.0
    %1195 = vmatprep.subr.mxu0 0.0
    %1196 = vmatpush1.xpose.msra.mxu0 0.0
    %1197 = vmatprep.subr.mxu0 0.0
    %1198 = vmatpush1.xpose.msra.mxu0 0.0
    %1199 = vmatprep.subr.mxu0 0.0
    %1200 = vmatpush1.xpose.msra.mxu0 0.0
    %1201 = vmatprep.subr.mxu0 0.0
    %1202 = vmatpush1.xpose.msra.mxu0 0.0
    %1203 = vmatprep.subr.mxu0 0.0
    %1204 = vmatpush1.xpose.msra.mxu0 0.0
    %1205 = vmatprep.subr.mxu0 0.0
    %1206 = vmatpush1.xpose.msra.mxu0 0.0
    %1207 = vmatprep.subr.mxu0 0.0
    %1208 = vmatpush1.xpose.msra.mxu0 0.0
    %1209 = vmatprep.subr.mxu0 0.0
    %1210 = vmatpush1.xpose.msra.mxu0 %v1177
    %1211 = vmatprep.subr.mxu0 0.0
    %1212 = vmatpush2.xpose.msra.mxu0 0.0
    %1213 = vmatprep.subr.mxu0 0.0
    %1214 = vmatpush2.xpose.msra.mxu0 0.0
    %1215 = vmatprep.subr.mxu0 0.0
    %1216 = vmatpush2.xpose.msra.mxu0 0.0
    %1217 = vmatprep.subr.mxu0 0.0
    %1218 = vmatpush2.xpose.msra.mxu0 0.0
    %1219 = vmatprep.subr.mxu0 0.0
    %1220 = vmatpush2.xpose.msra.mxu0 0.0
    %1221 = vmatprep.subr.mxu0 0.0
    %1222 = vmatpush2.xpose.msra.mxu0 0.0
    %1223 = vmatprep.subr.mxu0 0.0
    %1224 = vmatpush2.xpose.msra.mxu0 0.0
    %1225 = vmatprep.subr.mxu0 0.0
    %1226 = vmatpush2.xpose.msra.mxu0 0.0
    %1227 = vmatprep.subr.mxu0 0.0
    %1228 = vmatpush2.xpose.msra.mxu0 0.0
    %1229 = vmatprep.subr.mxu0 0.0
    %1230 = vmatpush2.xpose.msra.mxu0 0.0
    %1231 = vmatprep.subr.mxu0 0.0
    %1232 = vmatpush2.xpose.msra.mxu0 0.0
    %1233 = vmatprep.subr.mxu0 0.0
    %1234 = vmatpush2.xpose.msra.mxu0 0.0
    %1235 = vmatprep.subr.mxu0 0.0
    %1236 = vmatpush2.xpose.msra.mxu0 0.0
    %1237 = vmatprep.subr.mxu0 0.0
    %1238 = vmatpush2.xpose.msra.mxu0 0.0
    %1239 = vmatprep.subr.mxu0 0.0
    %1240 = vmatpush2.xpose.msra.mxu0 0.0
    %1241 = vmatprep.subr.mxu0 0.0
    %1242 = vmatpush2.xpose.msra.mxu0 0.0
    %1243 = vmatprep.mubr.f32.mxu0 0.0
    %1244 = vmatmul.mubr.f32.gmra.mxu0 %v1175
    %v1245 = vpop.f32.mrf.mxu0
    %v1246 = vadd.f32 0.0, %v1245
    %v1247 = vpop.f32.mrf.mxu0
    %1248 = vdwg.mxu0
    %v1249 = vsel %vm279, %v1168, -inf
    %1250 = vmax.xlane.f32.xlu0 %v1249
    %v1251 = vpop.xlane.xlu0 %1250
    %v1252 = vsel %vm279, %v1246, -inf
    %1253 = vmax.xlane.f32.xlu0 %v1252
    %v1254 = vpop.xlane.xlu0 %1253
    %v1255 = vsub.f32 %v1168, %v1251
    %v1256 = vsub.f32 %v1246, %v1254
    %v1257 = vmul.f32 %v1255, 1.442695
    %v1258 = vpow.pop %v1257
    %v1259 = vmul.f32 %v1256, 1.442695
    %v1260 = vpow.pop %v1259
    %v1261 = vsel %vm279, %v1258, 0.0
    %1262 = vadd.xlane.f32.xlu0 %v1261
    %v1263 = vpop.xlane.xlu0 %1262
    %v1264 = vsel %vm279, %v1260, 0.0
    %1265 = vadd.xlane.f32.xlu0 %v1264
    %v1266 = vpop.xlane.xlu0 %1265
    %v1267 = vrcp.pop %v1263
    %v1268 = vmul.f32 %v1258, %v1267
    %v1269 = vrcp.pop %v1266
    %v1270 = vmul.f32 %v1260, %v1269
    %1271 = vrot.lane.b32.xlu0 %v264, 112
    %v1272 = vpop.permute.xlu0 %1271
    %v1275 = vsel %vm279, %v1268, 0
    %1277 = vmatprep.subr.mxu0 0.0
    %1278 = vmatpush1.msra.mxu0 0.0
    %1279 = vmatprep.subr.mxu0 0.0
    %1280 = vmatpush1.msra.mxu0 0.0
    %1281 = vmatprep.subr.mxu0 0.0
    %1282 = vmatpush1.msra.mxu0 0.0
    %1283 = vmatprep.subr.mxu0 0.0
    %1284 = vmatpush1.msra.mxu0 0.0
    %1285 = vmatprep.subr.mxu0 0.0
    %1286 = vmatpush1.msra.mxu0 0.0
    %1287 = vmatprep.subr.mxu0 0.0
    %1288 = vmatpush1.msra.mxu0 0.0
    %1289 = vmatprep.subr.mxu0 0.0
    %1290 = vmatpush1.msra.mxu0 0.0
    %1291 = vmatprep.subr.mxu0 0.0
    %1292 = vmatpush1.msra.mxu0 0.0
    %1293 = vmatprep.subr.mxu0 0.0
    %1294 = vmatpush1.msra.mxu0 0.0
    %1295 = vmatprep.subr.mxu0 0.0
    %1296 = vmatpush1.msra.mxu0 0.0
    %1297 = vmatprep.subr.mxu0 0.0
    %1298 = vmatpush1.msra.mxu0 0.0
    %1299 = vmatprep.subr.mxu0 0.0
    %1300 = vmatpush1.msra.mxu0 0.0
    %1301 = vmatprep.subr.mxu0 0.0
    %1302 = vmatpush1.msra.mxu0 0.0
    %1303 = vmatprep.subr.mxu0 0.0
    %1304 = vmatpush1.msra.mxu0 0.0
    %1305 = vmatprep.subr.mxu0 0.0
    %1306 = vmatpush1.msra.mxu0 0.0
    %1307 = vmatprep.subr.mxu0 0.0
    %1308 = vmatpush1.msra.mxu0 %v1272
    %1309 = vmatprep.subr.mxu0 0.0
    %1310 = vmatpush2.msra.mxu0 0.0
    %1311 = vmatprep.subr.mxu0 0.0
    %1312 = vmatpush2.msra.mxu0 0.0
    %1313 = vmatprep.subr.mxu0 0.0
    %1314 = vmatpush2.msra.mxu0 0.0
    %1315 = vmatprep.subr.mxu0 0.0
    %1316 = vmatpush2.msra.mxu0 0.0
    %1317 = vmatprep.subr.mxu0 0.0
    %1318 = vmatpush2.msra.mxu0 0.0
    %1319 = vmatprep.subr.mxu0 0.0
    %1320 = vmatpush2.msra.mxu0 0.0
    %1321 = vmatprep.subr.mxu0 0.0
    %1322 = vmatpush2.msra.mxu0 0.0
    %1323 = vmatprep.subr.mxu0 0.0
    %1324 = vmatpush2.msra.mxu0 0.0
    %1325 = vmatprep.subr.mxu0 0.0
    %1326 = vmatpush2.msra.mxu0 0.0
    %1327 = vmatprep.subr.mxu0 0.0
    %1328 = vmatpush2.msra.mxu0 0.0
    %1329 = vmatprep.subr.mxu0 0.0
    %1330 = vmatpush2.msra.mxu0 0.0
    %1331 = vmatprep.subr.mxu0 0.0
    %1332 = vmatpush2.msra.mxu0 0.0
    %1333 = vmatprep.subr.mxu0 0.0
    %1334 = vmatpush2.msra.mxu0 0.0
    %1335 = vmatprep.subr.mxu0 0.0
    %1336 = vmatpush2.msra.mxu0 0.0
    %1337 = vmatprep.subr.mxu0 0.0
    %1338 = vmatpush2.msra.mxu0 0.0
    %1339 = vmatprep.subr.mxu0 0.0
    %1340 = vmatpush2.msra.mxu0 0.0
    %1341 = vmatprep.mubr.f32.mxu0 0.0
    %1342 = vmatmul.mubr.f32.gmra.mxu0 %v1275
    %v1343 = vpop.f32.mrf.mxu0
    %v1344 = vadd.f32 0.0, %v1343
    %v1345 = vpop.f32.mrf.mxu0
    %1346 = vdwg.mxu0
    %1347 = vrot.lane.b32.xlu0 %v269, 112
    %v1348 = vpop.permute.xlu0 %1347
    %v1351 = vsel %vm279, %v1270, 0
    %1353 = vmatprep.subr.mxu0 0.0
    %1354 = vmatpush1.msra.mxu0 0.0
    %1355 = vmatprep.subr.mxu0 0.0
    %1356 = vmatpush1.msra.mxu0 0.0
    %1357 = vmatprep.subr.mxu0 0.0
    %1358 = vmatpush1.msra.mxu0 0.0
    %1359 = vmatprep.subr.mxu0 0.0
    %1360 = vmatpush1.msra.mxu0 0.0
    %1361 = vmatprep.subr.mxu0 0.0
    %1362 = vmatpush1.msra.mxu0 0.0
    %1363 = vmatprep.subr.mxu0 0.0
    %1364 = vmatpush1.msra.mxu0 0.0
    %1365 = vmatprep.subr.mxu0 0.0
    %1366 = vmatpush1.msra.mxu0 0.0
    %1367 = vmatprep.subr.mxu0 0.0
    %1368 = vmatpush1.msra.mxu0 0.0
    %1369 = vmatprep.subr.mxu0 0.0
    %1370 = vmatpush1.msra.mxu0 0.0
    %1371 = vmatprep.subr.mxu0 0.0
    %1372 = vmatpush1.msra.mxu0 0.0
    %1373 = vmatprep.subr.mxu0 0.0
    %1374 = vmatpush1.msra.mxu0 0.0
    %1375 = vmatprep.subr.mxu0 0.0
    %1376 = vmatpush1.msra.mxu0 0.0
    %1377 = vmatprep.subr.mxu0 0.0
    %1378 = vmatpush1.msra.mxu0 0.0
    %1379 = vmatprep.subr.mxu0 0.0
    %1380 = vmatpush1.msra.mxu0 0.0
    %1381 = vmatprep.subr.mxu0 0.0
    %1382 = vmatpush1.msra.mxu0 0.0
    %1383 = vmatprep.subr.mxu0 0.0
    %1384 = vmatpush1.msra.mxu0 %v1348
    %1385 = vmatprep.subr.mxu0 0.0
    %1386 = vmatpush2.msra.mxu0 0.0
    %1387 = vmatprep.subr.mxu0 0.0
    %1388 = vmatpush2.msra.mxu0 0.0
    %1389 = vmatprep.subr.mxu0 0.0
    %1390 = vmatpush2.msra.mxu0 0.0
    %1391 = vmatprep.subr.mxu0 0.0
    %1392 = vmatpush2.msra.mxu0 0.0
    %1393 = vmatprep.subr.mxu0 0.0
    %1394 = vmatpush2.msra.mxu0 0.0
    %1395 = vmatprep.subr.mxu0 0.0
    %1396 = vmatpush2.msra.mxu0 0.0
    %1397 = vmatprep.subr.mxu0 0.0
    %1398 = vmatpush2.msra.mxu0 0.0
    %1399 = vmatprep.subr.mxu0 0.0
    %1400 = vmatpush2.msra.mxu0 0.0
    %1401 = vmatprep.subr.mxu0 0.0
    %1402 = vmatpush2.msra.mxu0 0.0
    %1403 = vmatprep.subr.mxu0 0.0
    %1404 = vmatpush2.msra.mxu0 0.0
    %1405 = vmatprep.subr.mxu0 0.0
    %1406 = vmatpush2.msra.mxu0 0.0
    %1407 = vmatprep.subr.mxu0 0.0
    %1408 = vmatpush2.msra.mxu0 0.0
    %1409 = vmatprep.subr.mxu0 0.0
    %1410 = vmatpush2.msra.mxu0 0.0
    %1411 = vmatprep.subr.mxu0 0.0
    %1412 = vmatpush2.msra.mxu0 0.0
    %1413 = vmatprep.subr.mxu0 0.0
    %1414 = vmatpush2.msra.mxu0 0.0
    %1415 = vmatprep.subr.mxu0 0.0
    %1416 = vmatpush2.msra.mxu0 0.0
    %1417 = vmatprep.mubr.f32.mxu0 0.0
    %1418 = vmatmul.mubr.f32.gmra.mxu0 %v1351
    %v1419 = vpop.f32.mrf.mxu0
    %v1420 = vadd.f32 0.0, %v1419
    %v1421 = vpop.f32.mrf.mxu0
    %1422 = vdwg.mxu0
    %v1424 = vsel %vm279, %v1344, 0
    %v1427 = vsel %vm279, %v1420, 0
    %1429 = vmatprep.subr.mxu0 0.0
    %1430 = vmatpush1.msra.mxu0 0.0
    %1431 = vmatprep.subr.mxu0 0.0
    %1432 = vmatpush1.msra.mxu0 0.0
    %1433 = vmatprep.subr.mxu0 0.0
    %1434 = vmatpush1.msra.mxu0 0.0
    %1435 = vmatprep.subr.mxu0 0.0
    %1436 = vmatpush1.msra.mxu0 0.0
    %1437 = vmatprep.subr.mxu0 0.0
    %1438 = vmatpush1.msra.mxu0 0.0
    %1439 = vmatprep.subr.mxu0 0.0
    %1440 = vmatpush1.msra.mxu0 0.0
    %1441 = vmatprep.subr.mxu0 0.0
    %1442 = vmatpush1.msra.mxu0 0.0
    %1443 = vmatprep.subr.mxu0 0.0
    %1444 = vmatpush1.msra.mxu0 0.0
    %1445 = vmatprep.subr.mxu0 0.0
    %1446 = vmatpush1.msra.mxu0 0.0
    %1447 = vmatprep.subr.mxu0 0.0
    %1448 = vmatpush1.msra.mxu0 0.0
    %1449 = vmatprep.subr.mxu0 0.0
    %1450 = vmatpush1.msra.mxu0 0.0
    %1451 = vmatprep.subr.mxu0 0.0
    %1452 = vmatpush1.msra.mxu0 0.0
    %1453 = vmatprep.subr.mxu0 0.0
    %1454 = vmatpush1.msra.mxu0 0.0
    %1455 = vmatprep.subr.mxu0 0.0
    %1456 = vmatpush1.msra.mxu0 0.0
    %1457 = vmatprep.subr.mxu0 0.0
    %1458 = vmatpush1.msra.mxu0 0.0
    %1459 = vmatprep.subr.mxu0 0.0
    %1460 = vmatpush1.msra.mxu0 %v274
    %1461 = vmatprep.subr.mxu0 0.0
    %1462 = vmatpush2.msra.mxu0 0.0
    %1463 = vmatprep.subr.mxu0 0.0
    %1464 = vmatpush2.msra.mxu0 0.0
    %1465 = vmatprep.subr.mxu0 0.0
    %1466 = vmatpush2.msra.mxu0 0.0
    %1467 = vmatprep.subr.mxu0 0.0
    %1468 = vmatpush2.msra.mxu0 0.0
    %1469 = vmatprep.subr.mxu0 0.0
    %1470 = vmatpush2.msra.mxu0 0.0
    %1471 = vmatprep.subr.mxu0 0.0
    %1472 = vmatpush2.msra.mxu0 0.0
    %1473 = vmatprep.subr.mxu0 0.0
    %1474 = vmatpush2.msra.mxu0 0.0
    %1475 = vmatprep.subr.mxu0 0.0
    %1476 = vmatpush2.msra.mxu0 0.0
    %1477 = vmatprep.subr.mxu0 0.0
    %1478 = vmatpush2.msra.mxu0 0.0
    %1479 = vmatprep.subr.mxu0 0.0
    %1480 = vmatpush2.msra.mxu0 0.0
    %1481 = vmatprep.subr.mxu0 0.0
    %1482 = vmatpush2.msra.mxu0 0.0
    %1483 = vmatprep.subr.mxu0 0.0
    %1484 = vmatpush2.msra.mxu0 0.0
    %1485 = vmatprep.subr.mxu0 0.0
    %1486 = vmatpush2.msra.mxu0 0.0
    %1487 = vmatprep.subr.mxu0 0.0
    %1488 = vmatpush2.msra.mxu0 0.0
    %1489 = vmatprep.subr.mxu0 0.0
    %1490 = vmatpush2.msra.mxu0 0.0
    %1491 = vmatprep.subr.mxu0 0.0
    %1492 = vmatpush2.msra.mxu0 0.0
    %1493 = vmatprep.mubr.f32.mxu0 0.0
    %1494 = vmatmul.mubr.f32.gmra.mxu0 %v1424
    %v1495 = vpop.f32.mrf.mxu0
    %v1496 = vadd.f32 0.0, %v1495
    %v1497 = vpop.f32.mrf.mxu0
    %1498 = vmatprep.mubr.f32.mxu0 0.0
    %1499 = vmatmul.mubr.f32.gmra.mxu0 %v1427
    %v1500 = vpop.f32.mrf.mxu0
    %v1501 = vadd.f32 0.0, %v1500
    %v1502 = vpop.f32.mrf.mxu0
    %1503 = vdwg.mxu0
    %v1504 = vadd.f32 %v1085, %v1496
    %v1505 = vadd.f32 %v1090, %v1501
    %1506 = vrot.lane.b32.xlu0 %v175, 104
    %v1507 = vpop.permute.xlu0 %1506
    %1508 = vrot.lane.b32.xlu0 %v175, 72
    %v1509 = vpop.permute.xlu0 %1508
    %v1510 = vsel %vm279, %v1507, 0
    %v1512 = vsel %vm279, %v1509, 0
    %1514 = vmatprep.subr.mxu0 0.0
    %1515 = vmatpush1.xpose.msra.mxu0 0.0
    %1516 = vmatprep.subr.mxu0 0.0
    %1517 = vmatpush1.xpose.msra.mxu0 0.0
    %1518 = vmatprep.subr.mxu0 0.0
    %1519 = vmatpush1.xpose.msra.mxu0 0.0
    %1520 = vmatprep.subr.mxu0 0.0
    %1521 = vmatpush1.xpose.msra.mxu0 0.0
    %1522 = vmatprep.subr.mxu0 0.0
    %1523 = vmatpush1.xpose.msra.mxu0 0.0
    %1524 = vmatprep.subr.mxu0 0.0
    %1525 = vmatpush1.xpose.msra.mxu0 0.0
    %1526 = vmatprep.subr.mxu0 0.0
    %1527 = vmatpush1.xpose.msra.mxu0 0.0
    %1528 = vmatprep.subr.mxu0 0.0
    %1529 = vmatpush1.xpose.msra.mxu0 0.0
    %1530 = vmatprep.subr.mxu0 0.0
    %1531 = vmatpush1.xpose.msra.mxu0 0.0
    %1532 = vmatprep.subr.mxu0 0.0
    %1533 = vmatpush1.xpose.msra.mxu0 0.0
    %1534 = vmatprep.subr.mxu0 0.0
    %1535 = vmatpush1.xpose.msra.mxu0 0.0
    %1536 = vmatprep.subr.mxu0 0.0
    %1537 = vmatpush1.xpose.msra.mxu0 0.0
    %1538 = vmatprep.subr.mxu0 0.0
    %1539 = vmatpush1.xpose.msra.mxu0 0.0
    %1540 = vmatprep.subr.mxu0 0.0
    %1541 = vmatpush1.xpose.msra.mxu0 0.0
    %1542 = vmatprep.subr.mxu0 0.0
    %1543 = vmatpush1.xpose.msra.mxu0 0.0
    %1544 = vmatprep.subr.mxu0 0.0
    %1545 = vmatpush1.xpose.msra.mxu0 %v1512
    %1546 = vmatprep.subr.mxu0 0.0
    %1547 = vmatpush2.xpose.msra.mxu0 0.0
    %1548 = vmatprep.subr.mxu0 0.0
    %1549 = vmatpush2.xpose.msra.mxu0 0.0
    %1550 = vmatprep.subr.mxu0 0.0
    %1551 = vmatpush2.xpose.msra.mxu0 0.0
    %1552 = vmatprep.subr.mxu0 0.0
    %1553 = vmatpush2.xpose.msra.mxu0 0.0
    %1554 = vmatprep.subr.mxu0 0.0
    %1555 = vmatpush2.xpose.msra.mxu0 0.0
    %1556 = vmatprep.subr.mxu0 0.0
    %1557 = vmatpush2.xpose.msra.mxu0 0.0
    %1558 = vmatprep.subr.mxu0 0.0
    %1559 = vmatpush2.xpose.msra.mxu0 0.0
    %1560 = vmatprep.subr.mxu0 0.0
    %1561 = vmatpush2.xpose.msra.mxu0 0.0
    %1562 = vmatprep.subr.mxu0 0.0
    %1563 = vmatpush2.xpose.msra.mxu0 0.0
    %1564 = vmatprep.subr.mxu0 0.0
    %1565 = vmatpush2.xpose.msra.mxu0 0.0
    %1566 = vmatprep.subr.mxu0 0.0
    %1567 = vmatpush2.xpose.msra.mxu0 0.0
    %1568 = vmatprep.subr.mxu0 0.0
    %1569 = vmatpush2.xpose.msra.mxu0 0.0
    %1570 = vmatprep.subr.mxu0 0.0
    %1571 = vmatpush2.xpose.msra.mxu0 0.0
    %1572 = vmatprep.subr.mxu0 0.0
    %1573 = vmatpush2.xpose.msra.mxu0 0.0
    %1574 = vmatprep.subr.mxu0 0.0
    %1575 = vmatpush2.xpose.msra.mxu0 0.0
    %1576 = vmatprep.subr.mxu0 0.0
    %1577 = vmatpush2.xpose.msra.mxu0 0.0
    %1578 = vmatprep.mubr.f32.mxu0 0.0
    %1579 = vmatmul.mubr.f32.gmra.mxu0 %v1510
    %v1580 = vpop.f32.mrf.mxu0
    %v1581 = vadd.f32 0.0, %v1580
    %v1582 = vpop.f32.mrf.mxu0
    %1583 = vdwg.mxu0
    %1584 = vrot.lane.b32.xlu0 %v180, 104
    %v1585 = vpop.permute.xlu0 %1584
    %1586 = vrot.lane.b32.xlu0 %v180, 72
    %v1587 = vpop.permute.xlu0 %1586
    %v1588 = vsel %vm279, %v1585, 0
    %v1590 = vsel %vm279, %v1587, 0
    %1592 = vmatprep.subr.mxu0 0.0
    %1593 = vmatpush1.xpose.msra.mxu0 0.0
    %1594 = vmatprep.subr.mxu0 0.0
    %1595 = vmatpush1.xpose.msra.mxu0 0.0
    %1596 = vmatprep.subr.mxu0 0.0
    %1597 = vmatpush1.xpose.msra.mxu0 0.0
    %1598 = vmatprep.subr.mxu0 0.0
    %1599 = vmatpush1.xpose.msra.mxu0 0.0
    %1600 = vmatprep.subr.mxu0 0.0
    %1601 = vmatpush1.xpose.msra.mxu0 0.0
    %1602 = vmatprep.subr.mxu0 0.0
    %1603 = vmatpush1.xpose.msra.mxu0 0.0
    %1604 = vmatprep.subr.mxu0 0.0
    %1605 = vmatpush1.xpose.msra.mxu0 0.0
    %1606 = vmatprep.subr.mxu0 0.0
    %1607 = vmatpush1.xpose.msra.mxu0 0.0
    %1608 = vmatprep.subr.mxu0 0.0
    %1609 = vmatpush1.xpose.msra.mxu0 0.0
    %1610 = vmatprep.subr.mxu0 0.0
    %1611 = vmatpush1.xpose.msra.mxu0 0.0
    %1612 = vmatprep.subr.mxu0 0.0
    %1613 = vmatpush1.xpose.msra.mxu0 0.0
    %1614 = vmatprep.subr.mxu0 0.0
    %1615 = vmatpush1.xpose.msra.mxu0 0.0
    %1616 = vmatprep.subr.mxu0 0.0
    %1617 = vmatpush1.xpose.msra.mxu0 0.0
    %1618 = vmatprep.subr.mxu0 0.0
    %1619 = vmatpush1.xpose.msra.mxu0 0.0
    %1620 = vmatprep.subr.mxu0 0.0
    %1621 = vmatpush1.xpose.msra.mxu0 0.0
    %1622 = vmatprep.subr.mxu0 0.0
    %1623 = vmatpush1.xpose.msra.mxu0 %v1590
    %1624 = vmatprep.subr.mxu0 0.0
    %1625 = vmatpush2.xpose.msra.mxu0 0.0
    %1626 = vmatprep.subr.mxu0 0.0
    %1627 = vmatpush2.xpose.msra.mxu0 0.0
    %1628 = vmatprep.subr.mxu0 0.0
    %1629 = vmatpush2.xpose.msra.mxu0 0.0
    %1630 = vmatprep.subr.mxu0 0.0
    %1631 = vmatpush2.xpose.msra.mxu0 0.0
    %1632 = vmatprep.subr.mxu0 0.0
    %1633 = vmatpush2.xpose.msra.mxu0 0.0
    %1634 = vmatprep.subr.mxu0 0.0
    %1635 = vmatpush2.xpose.msra.mxu0 0.0
    %1636 = vmatprep.subr.mxu0 0.0
    %1637 = vmatpush2.xpose.msra.mxu0 0.0
    %1638 = vmatprep.subr.mxu0 0.0
    %1639 = vmatpush2.xpose.msra.mxu0 0.0
    %1640 = vmatprep.subr.mxu0 0.0
    %1641 = vmatpush2.xpose.msra.mxu0 0.0
    %1642 = vmatprep.subr.mxu0 0.0
    %1643 = vmatpush2.xpose.msra.mxu0 0.0
    %1644 = vmatprep.subr.mxu0 0.0
    %1645 = vmatpush2.xpose.msra.mxu0 0.0
    %1646 = vmatprep.subr.mxu0 0.0
    %1647 = vmatpush2.xpose.msra.mxu0 0.0
    %1648 = vmatprep.subr.mxu0 0.0
    %1649 = vmatpush2.xpose.msra.mxu0 0.0
    %1650 = vmatprep.subr.mxu0 0.0
    %1651 = vmatpush2.xpose.msra.mxu0 0.0
    %1652 = vmatprep.subr.mxu0 0.0
    %1653 = vmatpush2.xpose.msra.mxu0 0.0
    %1654 = vmatprep.subr.mxu0 0.0
    %1655 = vmatpush2.xpose.msra.mxu0 0.0
    %1656 = vmatprep.mubr.f32.mxu0 0.0
    %1657 = vmatmul.mubr.f32.gmra.mxu0 %v1588
    %v1658 = vpop.f32.mrf.mxu0
    %v1659 = vadd.f32 0.0, %v1658
    %v1660 = vpop.f32.mrf.mxu0
    %1661 = vdwg.mxu0
    %v1662 = vsel %vm279, %v1581, -inf
    %1663 = vmax.xlane.f32.xlu0 %v1662
    %v1664 = vpop.xlane.xlu0 %1663
    %v1665 = vsel %vm279, %v1659, -inf
    %1666 = vmax.xlane.f32.xlu0 %v1665
    %v1667 = vpop.xlane.xlu0 %1666
    %v1668 = vsub.f32 %v1581, %v1664
    %v1669 = vsub.f32 %v1659, %v1667
    %v1670 = vmul.f32 %v1668, 1.442695
    %v1671 = vpow.pop %v1670
    %v1672 = vmul.f32 %v1669, 1.442695
    %v1673 = vpow.pop %v1672
    %v1674 = vsel %vm279, %v1671, 0.0
    %1675 = vadd.xlane.f32.xlu0 %v1674
    %v1676 = vpop.xlane.xlu0 %1675
    %v1677 = vsel %vm279, %v1673, 0.0
    %1678 = vadd.xlane.f32.xlu0 %v1677
    %v1679 = vpop.xlane.xlu0 %1678
    %v1680 = vrcp.pop %v1676
    %v1681 = vmul.f32 %v1671, %v1680
    %v1682 = vrcp.pop %v1679
    %v1683 = vmul.f32 %v1673, %v1682
    %1684 = vrot.lane.b32.xlu0 %v264, 104
    %v1685 = vpop.permute.xlu0 %1684
    %v1688 = vsel %vm279, %v1681, 0
    %1690 = vmatprep.subr.mxu0 0.0
    %1691 = vmatpush1.msra.mxu0 0.0
    %1692 = vmatprep.subr.mxu0 0.0
    %1693 = vmatpush1.msra.mxu0 0.0
    %1694 = vmatprep.subr.mxu0 0.0
    %1695 = vmatpush1.msra.mxu0 0.0
    %1696 = vmatprep.subr.mxu0 0.0
    %1697 = vmatpush1.msra.mxu0 0.0
    %1698 = vmatprep.subr.mxu0 0.0
    %1699 = vmatpush1.msra.mxu0 0.0
    %1700 = vmatprep.subr.mxu0 0.0
    %1701 = vmatpush1.msra.mxu0 0.0
    %1702 = vmatprep.subr.mxu0 0.0
    %1703 = vmatpush1.msra.mxu0 0.0
    %1704 = vmatprep.subr.mxu0 0.0
    %1705 = vmatpush1.msra.mxu0 0.0
    %1706 = vmatprep.subr.mxu0 0.0
    %1707 = vmatpush1.msra.mxu0 0.0
    %1708 = vmatprep.subr.mxu0 0.0
    %1709 = vmatpush1.msra.mxu0 0.0
    %1710 = vmatprep.subr.mxu0 0.0
    %1711 = vmatpush1.msra.mxu0 0.0
    %1712 = vmatprep.subr.mxu0 0.0
    %1713 = vmatpush1.msra.mxu0 0.0
    %1714 = vmatprep.subr.mxu0 0.0
    %1715 = vmatpush1.msra.mxu0 0.0
    %1716 = vmatprep.subr.mxu0 0.0
    %1717 = vmatpush1.msra.mxu0 0.0
    %1718 = vmatprep.subr.mxu0 0.0
    %1719 = vmatpush1.msra.mxu0 0.0
    %1720 = vmatprep.subr.mxu0 0.0
    %1721 = vmatpush1.msra.mxu0 %v1685
    %1722 = vmatprep.subr.mxu0 0.0
    %1723 = vmatpush2.msra.mxu0 0.0
    %1724 = vmatprep.subr.mxu0 0.0
    %1725 = vmatpush2.msra.mxu0 0.0
    %1726 = vmatprep.subr.mxu0 0.0
    %1727 = vmatpush2.msra.mxu0 0.0
    %1728 = vmatprep.subr.mxu0 0.0
    %1729 = vmatpush2.msra.mxu0 0.0
    %1730 = vmatprep.subr.mxu0 0.0
    %1731 = vmatpush2.msra.mxu0 0.0
    %1732 = vmatprep.subr.mxu0 0.0
    %1733 = vmatpush2.msra.mxu0 0.0
    %1734 = vmatprep.subr.mxu0 0.0
    %1735 = vmatpush2.msra.mxu0 0.0
    %1736 = vmatprep.subr.mxu0 0.0
    %1737 = vmatpush2.msra.mxu0 0.0
    %1738 = vmatprep.subr.mxu0 0.0
    %1739 = vmatpush2.msra.mxu0 0.0
    %1740 = vmatprep.subr.mxu0 0.0
    %1741 = vmatpush2.msra.mxu0 0.0
    %1742 = vmatprep.subr.mxu0 0.0
    %1743 = vmatpush2.msra.mxu0 0.0
    %1744 = vmatprep.subr.mxu0 0.0
    %1745 = vmatpush2.msra.mxu0 0.0
    %1746 = vmatprep.subr.mxu0 0.0
    %1747 = vmatpush2.msra.mxu0 0.0
    %1748 = vmatprep.subr.mxu0 0.0
    %1749 = vmatpush2.msra.mxu0 0.0
    %1750 = vmatprep.subr.mxu0 0.0
    %1751 = vmatpush2.msra.mxu0 0.0
    %1752 = vmatprep.subr.mxu0 0.0
    %1753 = vmatpush2.msra.mxu0 0.0
    %1754 = vmatprep.mubr.f32.mxu0 0.0
    %1755 = vmatmul.mubr.f32.gmra.mxu0 %v1688
    %v1756 = vpop.f32.mrf.mxu0
    %v1757 = vadd.f32 0.0, %v1756
    %v1758 = vpop.f32.mrf.mxu0
    %1759 = vdwg.mxu0
    %1760 = vrot.lane.b32.xlu0 %v269, 104
    %v1761 = vpop.permute.xlu0 %1760
    %v1764 = vsel %vm279, %v1683, 0
    %1766 = vmatprep.subr.mxu0 0.0
    %1767 = vmatpush1.msra.mxu0 0.0
    %1768 = vmatprep.subr.mxu0 0.0
    %1769 = vmatpush1.msra.mxu0 0.0
    %1770 = vmatprep.subr.mxu0 0.0
    %1771 = vmatpush1.msra.mxu0 0.0
    %1772 = vmatprep.subr.mxu0 0.0
    %1773 = vmatpush1.msra.mxu0 0.0
    %1774 = vmatprep.subr.mxu0 0.0
    %1775 = vmatpush1.msra.mxu0 0.0
    %1776 = vmatprep.subr.mxu0 0.0
    %1777 = vmatpush1.msra.mxu0 0.0
    %1778 = vmatprep.subr.mxu0 0.0
    %1779 = vmatpush1.msra.mxu0 0.0
    %1780 = vmatprep.subr.mxu0 0.0
    %1781 = vmatpush1.msra.mxu0 0.0
    %1782 = vmatprep.subr.mxu0 0.0
    %1783 = vmatpush1.msra.mxu0 0.0
    %1784 = vmatprep.subr.mxu0 0.0
    %1785 = vmatpush1.msra.mxu0 0.0
    %1786 = vmatprep.subr.mxu0 0.0
    %1787 = vmatpush1.msra.mxu0 0.0
    %1788 = vmatprep.subr.mxu0 0.0
    %1789 = vmatpush1.msra.mxu0 0.0
    %1790 = vmatprep.subr.mxu0 0.0
    %1791 = vmatpush1.msra.mxu0 0.0
    %1792 = vmatprep.subr.mxu0 0.0
    %1793 = vmatpush1.msra.mxu0 0.0
    %1794 = vmatprep.subr.mxu0 0.0
    %1795 = vmatpush1.msra.mxu0 0.0
    %1796 = vmatprep.subr.mxu0 0.0
    %1797 = vmatpush1.msra.mxu0 %v1761
    %1798 = vmatprep.subr.mxu0 0.0
    %1799 = vmatpush2.msra.mxu0 0.0
    %1800 = vmatprep.subr.mxu0 0.0
    %1801 = vmatpush2.msra.mxu0 0.0
    %1802 = vmatprep.subr.mxu0 0.0
    %1803 = vmatpush2.msra.mxu0 0.0
    %1804 = vmatprep.subr.mxu0 0.0
    %1805 = vmatpush2.msra.mxu0 0.0
    %1806 = vmatprep.subr.mxu0 0.0
    %1807 = vmatpush2.msra.mxu0 0.0
    %1808 = vmatprep.subr.mxu0 0.0
    %1809 = vmatpush2.msra.mxu0 0.0
    %1810 = vmatprep.subr.mxu0 0.0
    %1811 = vmatpush2.msra.mxu0 0.0
    %1812 = vmatprep.subr.mxu0 0.0
    %1813 = vmatpush2.msra.mxu0 0.0
    %1814 = vmatprep.subr.mxu0 0.0
    %1815 = vmatpush2.msra.mxu0 0.0
    %1816 = vmatprep.subr.mxu0 0.0
    %1817 = vmatpush2.msra.mxu0 0.0
    %1818 = vmatprep.subr.mxu0 0.0
    %1819 = vmatpush2.msra.mxu0 0.0
    %1820 = vmatprep.subr.mxu0 0.0
    %1821 = vmatpush2.msra.mxu0 0.0
    %1822 = vmatprep.subr.mxu0 0.0
    %1823 = vmatpush2.msra.mxu0 0.0
    %1824 = vmatprep.subr.mxu0 0.0
    %1825 = vmatpush2.msra.mxu0 0.0
    %1826 = vmatprep.subr.mxu0 0.0
    %1827 = vmatpush2.msra.mxu0 0.0
    %1828 = vmatprep.subr.mxu0 0.0
    %1829 = vmatpush2.msra.mxu0 0.0
    %1830 = vmatprep.mubr.f32.mxu0 0.0
    %1831 = vmatmul.mubr.f32.gmra.mxu0 %v1764
    %v1832 = vpop.f32.mrf.mxu0
    %v1833 = vadd.f32 0.0, %v1832
    %v1834 = vpop.f32.mrf.mxu0
    %1835 = vdwg.mxu0
    %v1837 = vsel %vm279, %v1757, 0
    %v1840 = vsel %vm279, %v1833, 0
    %1842 = vmatprep.subr.mxu0 0.0
    %1843 = vmatpush1.msra.mxu0 0.0
    %1844 = vmatprep.subr.mxu0 0.0
    %1845 = vmatpush1.msra.mxu0 0.0
    %1846 = vmatprep.subr.mxu0 0.0
    %1847 = vmatpush1.msra.mxu0 0.0
    %1848 = vmatprep.subr.mxu0 0.0
    %1849 = vmatpush1.msra.mxu0 0.0
    %1850 = vmatprep.subr.mxu0 0.0
    %1851 = vmatpush1.msra.mxu0 0.0
    %1852 = vmatprep.subr.mxu0 0.0
    %1853 = vmatpush1.msra.mxu0 0.0
    %1854 = vmatprep.subr.mxu0 0.0
    %1855 = vmatpush1.msra.mxu0 0.0
    %1856 = vmatprep.subr.mxu0 0.0
    %1857 = vmatpush1.msra.mxu0 0.0
    %1858 = vmatprep.subr.mxu0 0.0
    %1859 = vmatpush1.msra.mxu0 0.0
    %1860 = vmatprep.subr.mxu0 0.0
    %1861 = vmatpush1.msra.mxu0 0.0
    %1862 = vmatprep.subr.mxu0 0.0
    %1863 = vmatpush1.msra.mxu0 0.0
    %1864 = vmatprep.subr.mxu0 0.0
    %1865 = vmatpush1.msra.mxu0 0.0
    %1866 = vmatprep.subr.mxu0 0.0
    %1867 = vmatpush1.msra.mxu0 0.0
    %1868 = vmatprep.subr.mxu0 0.0
    %1869 = vmatpush1.msra.mxu0 0.0
    %1870 = vmatprep.subr.mxu0 0.0
    %1871 = vmatpush1.msra.mxu0 0.0
    %1872 = vmatprep.subr.mxu0 0.0
    %1873 = vmatpush1.msra.mxu0 %v275
    %1874 = vmatprep.subr.mxu0 0.0
    %1875 = vmatpush2.msra.mxu0 0.0
    %1876 = vmatprep.subr.mxu0 0.0
    %1877 = vmatpush2.msra.mxu0 0.0
    %1878 = vmatprep.subr.mxu0 0.0
    %1879 = vmatpush2.msra.mxu0 0.0
    %1880 = vmatprep.subr.mxu0 0.0
    %1881 = vmatpush2.msra.mxu0 0.0
    %1882 = vmatprep.subr.mxu0 0.0
    %1883 = vmatpush2.msra.mxu0 0.0
    %1884 = vmatprep.subr.mxu0 0.0
    %1885 = vmatpush2.msra.mxu0 0.0
    %1886 = vmatprep.subr.mxu0 0.0
    %1887 = vmatpush2.msra.mxu0 0.0
    %1888 = vmatprep.subr.mxu0 0.0
    %1889 = vmatpush2.msra.mxu0 0.0
    %1890 = vmatprep.subr.mxu0 0.0
    %1891 = vmatpush2.msra.mxu0 0.0
    %1892 = vmatprep.subr.mxu0 0.0
    %1893 = vmatpush2.msra.mxu0 0.0
    %1894 = vmatprep.subr.mxu0 0.0
    %1895 = vmatpush2.msra.mxu0 0.0
    %1896 = vmatprep.subr.mxu0 0.0
    %1897 = vmatpush2.msra.mxu0 0.0
    %1898 = vmatprep.subr.mxu0 0.0
    %1899 = vmatpush2.msra.mxu0 0.0
    %1900 = vmatprep.subr.mxu0 0.0
    %1901 = vmatpush2.msra.mxu0 0.0
    %1902 = vmatprep.subr.mxu0 0.0
    %1903 = vmatpush2.msra.mxu0 0.0
    %1904 = vmatprep.subr.mxu0 0.0
    %1905 = vmatpush2.msra.mxu0 0.0
    %1906 = vmatprep.mubr.f32.mxu0 0.0
    %1907 = vmatmul.mubr.f32.gmra.mxu0 %v1837
    %v1908 = vpop.f32.mrf.mxu0
    %v1909 = vadd.f32 0.0, %v1908
    %v1910 = vpop.f32.mrf.mxu0
    %1911 = vmatprep.mubr.f32.mxu0 0.0
    %1912 = vmatmul.mubr.f32.gmra.mxu0 %v1840
    %v1913 = vpop.f32.mrf.mxu0
    %v1914 = vadd.f32 0.0, %v1913
    %v1915 = vpop.f32.mrf.mxu0
    %1916 = vdwg.mxu0
    %v1917 = vadd.f32 %v1504, %v1909
    %v1918 = vadd.f32 %v1505, %v1914
    %v1919 = vlaneseq
    %v1920 = vshrl.u32 %v1919, 7
    %v1921 = vsub.s32 2, %v1920
    %v1922 = vrot.slane %v91, %v1921
    %v1923 = vadd.f32 %v1917, %v1922
    %v1924 = vadd.f32 %v1918, %v1922
    %v1925 = vadd.f32 %v85, %v1923
    %v1926 = vadd.f32 %v86, %v1924
    %v1927 = vsel %vm101, %v1925, 0.0
    %1928 = vadd.xlane.f32.xlu0 %v1927
    %v1929 = vpop.xlane.xlu0 %1928
    %v1930 = vsel %vm101, %v1926, 0.0
    %1931 = vadd.xlane.f32.xlu0 %v1930
    %v1932 = vpop.xlane.xlu0 %1931
    %v1933 = vrcp.pop 32.0
    %v1934 = vmul.f32 %v1929, %v1933
    %v1935 = vmul.f32 %v1932, %v1933
    %v1936 = vsub.f32 %v1925, %v1934
    %v1937 = vsub.f32 %v1926, %v1935
    %v1938 = vmul.f32 %v1936, %v1936
    %v1939 = vmul.f32 %v1937, %v1937
    %v1940 = vsel %vm101, %v1938, 0.0
    %1941 = vadd.xlane.f32.xlu0 %v1940
    %v1942 = vpop.xlane.xlu0 %1941
    %v1943 = vsel %vm101, %v1939, 0.0
    %1944 = vadd.xlane.f32.xlu0 %v1943
    %v1945 = vpop.xlane.xlu0 %1944
    %v1946 = vmul.f32 %v1942, %v1933
    %v1947 = vmul.f32 %v1945, %v1933
    %v1948 = vadd.f32 %v1946, 1e-05
    %v1949 = vadd.f32 %v1947, 1e-05
    %v1950 = vrsqrt.pop %v1948
    %v1951 = vrsqrt.pop %v1949
    %v1952 = vmul.f32 %v1936, %v1950
    %v1953 = vmul.f32 %v1937, %v1951
    %v1954 = vlaneseq
    %v1955 = vshrl.u32 %v1954, 7
    %v1956 = vsub.s32 3, %v1955
    %v1957 = vrot.slane %v91, %v1956
    %v1958 = vmul.f32 %v1952, %v1957
    %v1959 = vmul.f32 %v1953, %v1957
    %v1960 = vlaneseq
    %v1961 = vshrl.u32 %v1960, 7
    %v1962 = vsub.s32 4, %v1961
    %v1963 = vrot.slane %v91, %v1962
    %v1964 = vadd.f32 %v1958, %v1963
    %v1965 = vadd.f32 %v1959, %v1963
    %v1966 = vld [vmem:[#allocation7] sm:$0xff]
    %v1967 = vld [vmem:[#allocation7 + $0x8] sm:$0xff]
    %v1968 = vld [vmem:[#allocation7 + $0x10] sm:$0xff]
    %v1969 = vld [vmem:[#allocation7 + $0x18] sm:$0xff]
    %v1970 = vlaneseq
    %v1971 = vshrl.u32 %v1970, 7
    %v1972 = vsub.s32 5, %v1971
    %v1973 = vrot.slane %v91, %v1972
    %v1975 = vsel %vm101, %v1964, 0
    %v1978 = vsel %vm101, %v1965, 0
    %1980 = vmatprep.subr.mxu0 0.0
    %1981 = vmatpush1.msra.mxu0 0.0
    %1982 = vmatprep.subr.mxu0 0.0
    %1983 = vmatpush1.msra.mxu0 0.0
    %1984 = vmatprep.subr.mxu0 0.0
    %1985 = vmatpush1.msra.mxu0 0.0
    %1986 = vmatprep.subr.mxu0 0.0
    %1987 = vmatpush1.msra.mxu0 0.0
    %1988 = vmatprep.subr.mxu0 0.0
    %1989 = vmatpush1.msra.mxu0 0.0
    %1990 = vmatprep.subr.mxu0 0.0
    %1991 = vmatpush1.msra.mxu0 0.0
    %1992 = vmatprep.subr.mxu0 0.0
    %1993 = vmatpush1.msra.mxu0 0.0
    %1994 = vmatprep.subr.mxu0 0.0
    %1995 = vmatpush1.msra.mxu0 0.0
    %1996 = vmatprep.subr.mxu0 0.0
    %1997 = vmatpush1.msra.mxu0 0.0
    %1998 = vmatprep.subr.mxu0 0.0
    %1999 = vmatpush1.msra.mxu0 0.0
    %2000 = vmatprep.subr.mxu0 0.0
    %2001 = vmatpush1.msra.mxu0 0.0
    %2002 = vmatprep.subr.mxu0 0.0
    %2003 = vmatpush1.msra.mxu0 0.0
    %2004 = vmatprep.subr.mxu0 0.0
    %2005 = vmatpush1.msra.mxu0 %v1969
    %2006 = vmatprep.subr.mxu0 0.0
    %2007 = vmatpush1.msra.mxu0 %v1968
    %2008 = vmatprep.subr.mxu0 0.0
    %2009 = vmatpush1.msra.mxu0 %v1967
    %2010 = vmatprep.subr.mxu0 0.0
    %2011 = vmatpush1.msra.mxu0 %v1966
    %2012 = vmatprep.subr.mxu0 0.0
    %2013 = vmatpush2.msra.mxu0 0.0
    %2014 = vmatprep.subr.mxu0 0.0
    %2015 = vmatpush2.msra.mxu0 0.0
    %2016 = vmatprep.subr.mxu0 0.0
    %2017 = vmatpush2.msra.mxu0 0.0
    %2018 = vmatprep.subr.mxu0 0.0
    %2019 = vmatpush2.msra.mxu0 0.0
    %2020 = vmatprep.subr.mxu0 0.0
    %2021 = vmatpush2.msra.mxu0 0.0
    %2022 = vmatprep.subr.mxu0 0.0
    %2023 = vmatpush2.msra.mxu0 0.0
    %2024 = vmatprep.subr.mxu0 0.0
    %2025 = vmatpush2.msra.mxu0 0.0
    %2026 = vmatprep.subr.mxu0 0.0
    %2027 = vmatpush2.msra.mxu0 0.0
    %2028 = vmatprep.subr.mxu0 0.0
    %2029 = vmatpush2.msra.mxu0 0.0
    %2030 = vmatprep.subr.mxu0 0.0
    %2031 = vmatpush2.msra.mxu0 0.0
    %2032 = vmatprep.subr.mxu0 0.0
    %2033 = vmatpush2.msra.mxu0 0.0
    %2034 = vmatprep.subr.mxu0 0.0
    %2035 = vmatpush2.msra.mxu0 0.0
    %2036 = vmatprep.subr.mxu0 0.0
    %2037 = vmatpush2.msra.mxu0 0.0
    %2038 = vmatprep.subr.mxu0 0.0
    %2039 = vmatpush2.msra.mxu0 0.0
    %2040 = vmatprep.subr.mxu0 0.0
    %2041 = vmatpush2.msra.mxu0 0.0
    %2042 = vmatprep.subr.mxu0 0.0
    %2043 = vmatpush2.msra.mxu0 0.0
    %2044 = vmatprep.mubr.f32.mxu0 0.0
    %2045 = vmatmul.mubr.f32.gmra.mxu0 %v1975
    %v2046 = vpop.f32.mrf.mxu0
    %v2047 = vadd.f32 %v1973, %v2046
    %v2048 = vpop.f32.mrf.mxu0
    %2049 = vmatprep.mubr.f32.mxu0 0.0
    %2050 = vmatmul.mubr.f32.gmra.mxu0 %v1978
    %v2051 = vpop.f32.mrf.mxu0
    %v2052 = vadd.f32 %v1973, %v2051
    %v2053 = vpop.f32.mrf.mxu0
    %2054 = vdwg.mxu0
    %v2055 = vmax.f32 %v2047, 0.0
    %v2056 = vmax.f32 %v2052, 0.0
    %v2057 = vld [vmem:[%s6] sm:$0xff]
    %v2058 = vld [vmem:[%s6 + $0x8] sm:$0xff]
    %v2059 = vld [vmem:[%s6 + $0x10] sm:$0xff]
    %v2060 = vld [vmem:[%s6 + $0x18] sm:$0xff]
    %v2061 = vld [vmem:[%s6 + $0x20] sm:$0xff]
    %v2062 = vld [vmem:[%s6 + $0x28] sm:$0xff]
    %v2063 = vld [vmem:[%s6 + $0x30] sm:$0xff]
    %v2064 = vld [vmem:[%s6 + $0x38] sm:$0xff]
    %v2065 = vlaneseq
    %v2066 = vshrl.u32 %v2065, 7
    %v2067 = vsub.s32 6, %v2066
    %v2068 = vrot.slane %v91, %v2067
    %vm2069 = vcmask 523264
    %v2071 = vsel %vm2069, %v2055, 0
    %v2074 = vsel %vm2069, %v2056, 0
    %2076 = vmatprep.subr.mxu0 0.0
    %2077 = vmatpush1.msra.mxu0 0.0
    %2078 = vmatprep.subr.mxu0 0.0
    %2079 = vmatpush1.msra.mxu0 0.0
    %2080 = vmatprep.subr.mxu0 0.0
    %2081 = vmatpush1.msra.mxu0 0.0
    %2082 = vmatprep.subr.mxu0 0.0
    %2083 = vmatpush1.msra.mxu0 0.0
    %2084 = vmatprep.subr.mxu0 0.0
    %2085 = vmatpush1.msra.mxu0 0.0
    %2086 = vmatprep.subr.mxu0 0.0
    %2087 = vmatpush1.msra.mxu0 0.0
    %2088 = vmatprep.subr.mxu0 0.0
    %2089 = vmatpush1.msra.mxu0 0.0
    %2090 = vmatprep.subr.mxu0 0.0
    %2091 = vmatpush1.msra.mxu0 0.0
    %2092 = vmatprep.subr.mxu0 0.0
    %2093 = vmatpush1.msra.mxu0 %v2064
    %2094 = vmatprep.subr.mxu0 0.0
    %2095 = vmatpush1.msra.mxu0 %v2063
    %2096 = vmatprep.subr.mxu0 0.0
    %2097 = vmatpush1.msra.mxu0 %v2062
    %2098 = vmatprep.subr.mxu0 0.0
    %2099 = vmatpush1.msra.mxu0 %v2061
    %2100 = vmatprep.subr.mxu0 0.0
    %2101 = vmatpush1.msra.mxu0 %v2060
    %2102 = vmatprep.subr.mxu0 0.0
    %2103 = vmatpush1.msra.mxu0 %v2059
    %2104 = vmatprep.subr.mxu0 0.0
    %2105 = vmatpush1.msra.mxu0 %v2058
    %2106 = vmatprep.subr.mxu0 0.0
    %2107 = vmatpush1.msra.mxu0 %v2057
    %2108 = vmatprep.subr.mxu0 0.0
    %2109 = vmatpush2.msra.mxu0 0.0
    %2110 = vmatprep.subr.mxu0 0.0
    %2111 = vmatpush2.msra.mxu0 0.0
    %2112 = vmatprep.subr.mxu0 0.0
    %2113 = vmatpush2.msra.mxu0 0.0
    %2114 = vmatprep.subr.mxu0 0.0
    %2115 = vmatpush2.msra.mxu0 0.0
    %2116 = vmatprep.subr.mxu0 0.0
    %2117 = vmatpush2.msra.mxu0 0.0
    %2118 = vmatprep.subr.mxu0 0.0
    %2119 = vmatpush2.msra.mxu0 0.0
    %2120 = vmatprep.subr.mxu0 0.0
    %2121 = vmatpush2.msra.mxu0 0.0
    %2122 = vmatprep.subr.mxu0 0.0
    %2123 = vmatpush2.msra.mxu0 0.0
    %2124 = vmatprep.subr.mxu0 0.0
    %2125 = vmatpush2.msra.mxu0 0.0
    %2126 = vmatprep.subr.mxu0 0.0
    %2127 = vmatpush2.msra.mxu0 0.0
    %2128 = vmatprep.subr.mxu0 0.0
    %2129 = vmatpush2.msra.mxu0 0.0
    %2130 = vmatprep.subr.mxu0 0.0
    %2131 = vmatpush2.msra.mxu0 0.0
    %2132 = vmatprep.subr.mxu0 0.0
    %2133 = vmatpush2.msra.mxu0 0.0
    %2134 = vmatprep.subr.mxu0 0.0
    %2135 = vmatpush2.msra.mxu0 0.0
    %2136 = vmatprep.subr.mxu0 0.0
    %2137 = vmatpush2.msra.mxu0 0.0
    %2138 = vmatprep.subr.mxu0 0.0
    %2139 = vmatpush2.msra.mxu0 0.0
    %2140 = vmatprep.mubr.f32.mxu0 0.0
    %2141 = vmatmul.mubr.f32.gmra.mxu0 %v2071
    %v2142 = vpop.f32.mrf.mxu0
    %v2143 = vadd.f32 %v2068, %v2142
    %v2144 = vpop.f32.mrf.mxu0
    %2145 = vmatprep.mubr.f32.mxu0 0.0
    %2146 = vmatmul.mubr.f32.gmra.mxu0 %v2074
    %v2147 = vpop.f32.mrf.mxu0
    %v2148 = vadd.f32 %v2068, %v2147
    %v2149 = vpop.f32.mrf.mxu0
    %2150 = vdwg.mxu0
    %v2151 = vadd.f32 %v1964, %v2143
    %v2152 = vadd.f32 %v1965, %v2148
    %v2153 = vsel %vm101, %v2151, 0.0
    %2154 = vadd.xlane.f32.xlu0 %v2153
    %v2155 = vpop.xlane.xlu0 %2154
    %v2156 = vsel %vm101, %v2152, 0.0
    %2157 = vadd.xlane.f32.xlu0 %v2156
    %v2158 = vpop.xlane.xlu0 %2157
    %v2159 = vmul.f32 %v2155, %v1933
    %v2160 = vmul.f32 %v2158, %v1933
    %v2161 = vsub.f32 %v2151, %v2159
    %v2162 = vsub.f32 %v2152, %v2160
    %v2163 = vmul.f32 %v2161, %v2161
    %v2164 = vmul.f32 %v2162, %v2162
    %v2165 = vsel %vm101, %v2163, 0.0
    %2166 = vadd.xlane.f32.xlu0 %v2165
    %v2167 = vpop.xlane.xlu0 %2166
    %v2168 = vsel %vm101, %v2164, 0.0
    %2169 = vadd.xlane.f32.xlu0 %v2168
    %v2170 = vpop.xlane.xlu0 %2169
    %v2171 = vmul.f32 %v2167, %v1933
    %v2172 = vmul.f32 %v2170, %v1933
    %v2173 = vadd.f32 %v2171, 1e-05
    %v2174 = vadd.f32 %v2172, 1e-05
    %v2175 = vrsqrt.pop %v2173
    %v2176 = vrsqrt.pop %v2174
    %v2177 = vmul.f32 %v2161, %v2175
    %v2178 = vmul.f32 %v2162, %v2176
    %v2179 = vlaneseq
    %v2180 = vshrl.u32 %v2179, 7
    %v2181 = vsub.s32 7, %v2180
    %v2182 = vrot.slane %v91, %v2181
    %v2183 = vmul.f32 %v2177, %v2182
    %v2184 = vmul.f32 %v2178, %v2182
    %v2185 = vlaneseq
    %v2186 = vshrl.u32 %v2185, 7
    %v2187 = vsub.s32 0, %v2186
    %v2188 = vrot.slane %v92, %v2187
    %v2189 = vadd.f32 %v2183, %v2188
    %v2190 = vadd.f32 %v2184, %v2188
    %2191 = vst.msk [vmem:[#allocation10] sm:$0xff] %vm101, %v2189
    %2192 = vst.msk [vmem:[#allocation10 + $0x8] sm:$0xff] %vm101, %v2190
    // Predicated region
    $region50: #{tpu_custom_call.1} parent=1 // pred_check
      _
    $region51: #{tpu_custom_call.1} parent=1 // pred_check_branch
      %2194 = sbr.rel (0) target = $region53
    $region52: #{tpu_custom_call.1} parent=1 // pred_region
      %s2196 = ssub.s32 256, 256
      %2197 = vsyncadd [#allocation4], %s2196
      %s2198 = sshll.u32 [#allocation10], 4
      %s2199 = int_to_ptr.vmem [resolvable:$true] %s2198
      %2204 = dma.vmem_to_hbm [thread:$0]  %s2199, 256, %s8, [#allocation4], 128, 128, 8
    $region53: #{tpu_custom_call.1} parent=1 // pred_fallthru
      _
    // Predicated region
    $region54: #{tpu_custom_call.1} parent=1 // pred_check
      _
    $region55: #{tpu_custom_call.1} parent=1 // pred_check_branch
      %2206 = sbr.rel (0) target = $region57
    $region56: #{tpu_custom_call.1} parent=1 // pred_region
      %2207 = dma.done [#allocation4], 256
    $region57: #{tpu_custom_call.1} parent=1 // pred_fallthru
      _
    %2208 = vsyncpa [#allocation3], 1
    %2209 = vsyncpa [#allocation6], 1
    %2210 = vsyncpa [#allocation9], 1
    %2211 = vsyncpa [#allocation4], 1

</llo_original>
